<compile_context>
chip_gen: v6e
topology: v6e:2x2x1
jax: 0.10.0
libtpu: 0.0.40
codegen_flags: <defaults>
</compile_context>

<pallas_src>
import math
from typing import NamedTuple

import jax
import jax.numpy as jnp
import numpy as np
from jax.experimental import pallas as pl
from jax.experimental.pallas import tpu as pltpu


def _round_up(x, m):
    return ((x + m - 1) // m) * m


# ---------------------------------------------------------------------------
# Kernels
# ---------------------------------------------------------------------------
def _ffn_kernel_resident(x_ref, w1_ref, b1_ref, w2_ref, b2_ref, o_ref):
    """Weights fully VMEM-resident (single hidden chunk, full output width):
         o = relu(x @ W1 + b1) @ W2 + b2
       x is cast to the weight compute dtype in-kernel (VPU), so the wrapper
       never materializes a padded/cast copy of x in HBM."""
    xv = x_ref[...].astype(w1_ref.dtype)
    h = jnp.dot(xv, w1_ref[...], preferred_element_type=jnp.float32)
    h = jnp.maximum(h + b1_ref[...], 0.0)
    y = jnp.dot(h.astype(w2_ref.dtype), w2_ref[...],
                preferred_element_type=jnp.float32)
    o_ref[...] = (y + b2_ref[...]).astype(o_ref.dtype)


def _ffn_kernel_streamed(x_ref, w1_ref, b1_ref, w2_ref, b2_ref, o_ref, acc_ref):
    """Hidden dim streamed in chunks (grid axis 2, 'arbitrary'):
         acc += relu(x @ W1[:, kc] + b1[kc]) @ W2[kc, nc]
       finalized with + b2 and a single downcast on the last hidden chunk."""
    k = pl.program_id(2)

    @pl.when(k == 0)
    def _():
        acc_ref[...] = jnp.zeros_like(acc_ref)

    xv = x_ref[...].astype(w1_ref.dtype)
    h = jnp.dot(xv, w1_ref[...], preferred_element_type=jnp.float32)
    h = jnp.maximum(h + b1_ref[...], 0.0)
    acc_ref[...] += jnp.dot(h.astype(w2_ref.dtype), w2_ref[...],
                            preferred_element_type=jnp.float32)

    @pl.when(k == pl.num_programs(2) - 1)
    def _():
        o_ref[...] = (acc_ref[...] + b2_ref[...]).astype(o_ref.dtype)


# ---------------------------------------------------------------------------
# Parameter preparation (pad + cast once, outside the per-call hot path)
# ---------------------------------------------------------------------------
class FFNParams(NamedTuple):
    w1: jax.Array      # (d_in, d_hid_p)     compute dtype
    b1: jax.Array      # (1, d_hid_p)        float32
    w2: jax.Array      # (d_hid_p, d_out_p)  compute dtype
    b2: jax.Array      # (1, d_out_p)        float32
    d_out: int         # un-padded output width


def prepare_ffn_params(w1, b1, w2, b2, *, compute_dtype=jnp.bfloat16):
    """w1: (d_in, d_hid), w2: (d_hid, d_out).  Pads hid to a multiple of 256
    (full MXU contraction on v6e/v7x) and out to a multiple of 128 (lane-dense
    unmasked stores); zero padding is inert through relu/matmul."""
    d_hid = w1.shape[1]
    d_out = w2.shape[1]
    d_hid_p = _round_up(max(d_hid, 256), 256)
    d_out_p = _round_up(max(d_out, 128), 128)
    w1_p = jnp.pad(w1, ((0, 0), (0, d_hid_p - d_hid))).astype(compute_dtype)
    b1_p = jnp.pad(b1, (0, d_hid_p - d_hid)).astype(jnp.float32).reshape(1, d_hid_p)
    w2_p = jnp.pad(w2, ((0, d_hid_p - d_hid),
                        (0, d_out_p - d_out))).astype(compute_dtype)
    b2_p = jnp.pad(b2, (0, d_out_p - d_out)).astype(jnp.float32).reshape(1, d_out_p)
    return FFNParams(w1_p, b1_p, w2_p, b2_p, d_out)


# ---------------------------------------------------------------------------
# Tiling / VMEM-budget selection
# ---------------------------------------------------------------------------
def _vmem_budget_bytes():
    try:
        cap = int(pltpu.get_tpu_info().vmem_capacity_bytes)
    except Exception:
        cap = 64 * 1024 * 1024            # conservative (v7x per-TC)
    # ~85% of physical: ~110 MiB on v5e/v6e (128 MiB), ~54 MiB on v7x (64 MiB).
    return min(int(cap * 0.85), 112 * 1024 * 1024)


def _is_v5e():
    try:
        kind = jax.devices()[0].device_kind.lower()
        return ("v5 lite" in kind) or ("v5e" in kind) or ("v5litepod" in kind)
    except Exception:
        return False


def _footprint_bytes(tile_m, tile_n, hid_chunk, d_in, x_item, w_item, out_item,
                     streamed, weight_bufs=2):
    fp = 2 * tile_m * d_in * x_item                    # x tile (double-buffered)
    fp += weight_bufs * d_in * hid_chunk * w_item      # W1 chunk
    fp += weight_bufs * hid_chunk * tile_n * w_item    # W2 chunk
    fp += 2 * (hid_chunk + tile_n) * 4                 # b1 / b2 chunks (f32)
    fp += 2 * tile_m * tile_n * out_item               # output tile
    if streamed:
        fp += tile_m * tile_n * 4                      # f32 accumulator scratch
    return fp


def _select_tiling(m, d_in, d_hid_p, d_out_p, x_item, w_item, out_item, budget,
                   v5e_like):
    m_16 = _round_up(m, 16)
    cap = m_16
    if m_16 >= 1024:
        # Prefer >=2 row tiles so dual-TensorCore chips (v7x) keep both TCs busy.
        cap = _round_up((m_16 + 1) // 2, 16)
    tm_cands = []
    for c in (1024, 512, 256, 128, 64, 32, 16):
        tm = min(c, cap)
        if tm not in tm_cands:
            tm_cands.append(tm)

    # 1) Weight-resident: single hidden chunk + full output width -> W1/W2 block
    #    indices are constant across the whole grid -> fetched from HBM once.
    for tm in tm_cands:
        fp = _footprint_bytes(tm, d_out_p, d_hid_p, d_in, x_item, w_item,
                              out_item, streamed=False)
        if fp <= budget:
            return dict(tile_m=tm, tile_n=d_out_p, hid_chunk=d_hid_p,
                        streamed=False, weight_bufs=2)

    # 2) Streamed: maximize tile_m first (arithmetic intensity per weight byte
    #    ~ tile_m), then the largest output-column / hidden chunks that fit.
    weight_bufs = 3 if v5e_like else 2
    for tm in tm_cands:
        for tn_c in (2048, 1024, 512, 256, 128):
            tn = min(tn_c, d_out_p)
            if d_out_p % tn:
                continue
            for hc_c in (2048, 1024, 512, 256):
                hc = min(hc_c, d_hid_p)
                if d_hid_p % hc:
                    continue
                fp = _footprint_bytes(tm, tn, hc, d_in, x_item, w_item, out_item,
                                      streamed=True, weight_bufs=weight_bufs)
                if fp <= budget:
                    return dict(tile_m=tm, tile_n=tn, hid_chunk=hc,
                                streamed=True, weight_bufs=weight_bufs)

    # 3) Fallback: minimal tiles (relies on vmem_limit headroom).
    return dict(tile_m=16, tile_n=min(128, d_out_p),
                hid_chunk=min(256, d_hid_p), streamed=True, weight_bufs=2)


# ---------------------------------------------------------------------------
# Wrapper
# ---------------------------------------------------------------------------
def ffn_pallas(x, params: FFNParams, *, out_dtype=None, interpret=False):
    """x: (..., d_in) -> (..., d_out)."""
    out_dtype = out_dtype if out_dtype is not None else x.dtype
    d_in = x.shape[-1]
    lead = x.shape[:-1]
    m = math.prod(lead) if lead else 1

    w1_p, b1_p, w2_p, b2_p, d_out = params
    assert w1_p.shape[0] == d_in, "input feature mismatch"
    d_hid_p = w1_p.shape[1]
    d_out_p = w2_p.shape[1]

    x_item = int(np.dtype(x.dtype).itemsize)
    w_item = int(np.dtype(w1_p.dtype).itemsize)
    out_item = int(np.dtype(out_dtype).itemsize)

    vmem_limit = _vmem_budget_bytes()
    t = _select_tiling(m, d_in, d_hid_p, d_out_p, x_item, w_item, out_item,
                       budget=int(vmem_limit * 0.75), v5e_like=_is_v5e())
    tile_m, tile_n, hid_chunk = t["tile_m"], t["tile_n"], t["hid_chunk"]
    streamed, weight_bufs = t["streamed"], t["weight_bufs"]

    m_p = _round_up(m, tile_m)
    x2 = x.reshape(m, d_in)
    if m_p != m:
        # TODO(synk): handle the ragged last row tile in-kernel to avoid this pad.
        x2 = jnp.pad(x2, ((0, m_p - m), (0, 0)))

    n_i = m_p // tile_m
    n_j = d_out_p // tile_n
    n_k = d_hid_p // hid_chunk

    # Advisory HBM-traffic hint; accounts for weight re-streaming when tiled.
    w1_reads = 1 if n_k == 1 else n_i * n_j
    w2_reads = 1 if (n_k == 1 and n_j == 1) else n_i
    cost = pl.CostEstimate(
        flops=2 * m_p * d_in * d_hid_p + 2 * m_p * d_hid_p * d_out_p,
        transcendentals=0,
        bytes_accessed=(x2.size * x_item
                        + w1_reads * w1_p.size * w_item
                        + w2_reads * w2_p.size * w_item
                        + n_i * n_j * (b1_p.size + b2_p.size) * 4
                        + m_p * d_out_p * out_item),
    )

    if streamed:
        # Deeper weight buffering (v5e) only when streaming.
        if weight_bufs != 2:
            wspec = lambda shape, imap: pl.BlockSpec(
                shape, imap, pipeline_mode=pl.Buffered(weight_bufs))
        else:
            wspec = lambda shape, imap: pl.BlockSpec(shape, imap)
        grid = (n_i, n_j, n_k)
        in_specs = [
            pl.BlockSpec((tile_m, d_in), lambda i, j, k: (i, 0)),       # x tile
            wspec((d_in, hid_chunk), lambda i, j, k: (0, k)),           # W1 chunk
            pl.BlockSpec((1, hid_chunk), lambda i, j, k: (0, k)),       # b1 chunk
            wspec((hid_chunk, tile_n), lambda i, j, k: (k, j)),         # W2 chunk
            pl.BlockSpec((1, tile_n), lambda i, j, k: (0, j)),          # b2 tile
        ]
        out_specs = pl.BlockSpec((tile_m, tile_n), lambda i, j, k: (i, j))
        scratch = [pltpu.VMEM((tile_m, tile_n), jnp.float32)]
        kernel = _ffn_kernel_streamed
        dims = ("parallel", "parallel", "arbitrary")
    else:
        grid = (n_i,)
        in_specs = [
            pl.BlockSpec((tile_m, d_in), lambda i: (i, 0)),             # x tile
            pl.BlockSpec((d_in, d_hid_p), lambda i: (0, 0)),            # W1 (resident)
            pl.BlockSpec((1, d_hid_p), lambda i: (0, 0)),               # b1
            pl.BlockSpec((d_hid_p, d_out_p), lambda i: (0, 0)),         # W2 (resident)
            pl.BlockSpec((1, d_out_p), lambda i: (0, 0)),               # b2
        ]
        out_specs = pl.BlockSpec((tile_m, d_out_p), lambda i: (i, 0))
        scratch = []
        kernel = _ffn_kernel_resident
        dims = ("parallel",)

    out = pl.pallas_call(
        kernel,
        out_shape=jax.ShapeDtypeStruct((m_p, d_out_p), out_dtype),
        grid_spec=pltpu.PrefetchScalarGridSpec(
            num_scalar_prefetch=0,
            grid=grid,
            in_specs=in_specs,
            out_specs=out_specs,
            scratch_shapes=scratch,
        ),
        compiler_params=pltpu.CompilerParams(
            dimension_semantics=dims,
            vmem_limit_bytes=vmem_limit,
        ),
        cost_estimate=cost,
        interpret=interpret,
    )(x2, w1_p, b1_p, w2_p, b2_p)

    out = out[:m, :d_out]
    return out.reshape(*lead, d_out)


# ---------------------------------------------------------------------------
# Init mirroring nn.Linear (uniform(-1/sqrt(fan_in), 1/sqrt(fan_in)))
# ---------------------------------------------------------------------------
def init_ffn_params(key, ffn_inputs, ffn_hiddens, ffn_outputs, dtype=jnp.float32):
    k1, k2, k3, k4 = jax.random.split(key, 4)
    bound1 = 1.0 / math.sqrt(ffn_inputs)
    bound2 = 1.0 / math.sqrt(ffn_hiddens)
    # stored as (in, out): kernel computes x @ W (transpose of torch layout)
    w1 = jax.random.uniform(k1, (ffn_inputs, ffn_hiddens), dtype, -bound1, bound1)
    b1 = jax.random.uniform(k2, (ffn_hiddens,), dtype, -bound1, bound1)
    w2 = jax.random.uniform(k3, (ffn_hiddens, ffn_outputs), dtype, -bound2, bound2)
    b2 = jax.random.uniform(k4, (ffn_outputs,), dtype, -bound2, bound2)
    return w1, b1, w2, b2


if __name__ == "__main__":
    # Small input, module-default layer sizes: FFN(128, 1024, 512).
    batch, seq = 2, 8
    ffn_inputs, ffn_hiddens, ffn_outputs = 128, 1024, 512

    key = jax.random.PRNGKey(0)
    kx, kp = jax.random.split(key)
    x = jax.random.normal(kx, (batch, seq, ffn_inputs), jnp.float32)
    w1, b1, w2, b2 = init_ffn_params(kp, ffn_inputs, ffn_hiddens, ffn_outputs)

    # Plain-JAX reference of the forward pass.
    ref = jnp.maximum(x @ w1 + b1, 0.0) @ w2 + b2

    # f32 compute path.
    p_f32 = prepare_ffn_params(w1, b1, w2, b2, compute_dtype=jnp.float32)
    y_f32 = jax.block_until_ready(ffn_pallas(x, p_f32))
    assert y_f32.shape == (batch, seq, ffn_outputs)
    assert jnp.allclose(y_f32, ref, atol=2e-2, rtol=2e-2), "f32 path mismatch"

    # Default bf16 MXU path (f32 accumulation) — looser tolerance (activations
    # are rounded to bf16 before the second matmul).
    p_bf16 = prepare_ffn_params(w1, b1, w2, b2, compute_dtype=jnp.bfloat16)
    y_bf16 = jax.block_until_ready(ffn_pallas(x, p_bf16))
    assert y_bf16.shape == (batch, seq, ffn_outputs)
    assert jnp.allclose(y_bf16, ref, atol=1e-1, rtol=1e-1), "bf16 path mismatch"

    print("KERNEL_OK")
</pallas_src>

<mosaic_0001>
module attributes {stable_mosaic.version = 11 : i64} {
  func.func @_ffn_kernel_resident(%arg0: i32, %arg1: memref<16x128xf32, #tpu.memory_space<vmem>>, %arg2: memref<128x1024xf32, #tpu.memory_space<vmem>>, %arg3: memref<1x1024xf32, #tpu.memory_space<vmem>>, %arg4: memref<1024x512xf32, #tpu.memory_space<vmem>>, %arg5: memref<1x512xf32, #tpu.memory_space<vmem>>, %arg6: memref<16x512xf32, #tpu.memory_space<vmem>>) attributes {dimension_semantics = [#tpu.dimension_semantics<parallel>], iteration_bounds = array<i64: 1>, scalar_prefetch = 0 : i64, scratch_operands = 0 : i64, tpu.core_type = #tpu.core_type<tc>, window_params = [{transform_indices = @transform_0, window_bounds = array<i64: 16, 128>}, {pipeline_mode = #tpu.pipeline_mode<synchronous>, transform_indices = @transform_1, window_bounds = array<i64: 128, 1024>}, {pipeline_mode = #tpu.pipeline_mode<synchronous>, transform_indices = @transform_2, window_bounds = array<i64: 1, 1024>}, {pipeline_mode = #tpu.pipeline_mode<synchronous>, transform_indices = @transform_3, window_bounds = array<i64: 1024, 512>}, {pipeline_mode = #tpu.pipeline_mode<synchronous>, transform_indices = @transform_4, window_bounds = array<i64: 1, 512>}, {transform_indices = @transform_5, window_bounds = array<i64: 16, 512>}]} {
    %c0 = arith.constant 0 : index
    %c0_0 = arith.constant 0 : index
    %0 = vector.load %arg1[%c0, %c0_0] : memref<16x128xf32, #tpu.memory_space<vmem>>, vector<16x128xf32>
    %c0_1 = arith.constant 0 : index
    %c0_2 = arith.constant 0 : index
    %1 = vector.load %arg2[%c0_1, %c0_2] : memref<128x1024xf32, #tpu.memory_space<vmem>>, vector<128x1024xf32>
    %cst = arith.constant dense<0.000000e+00> : vector<16x1024xf32>
    %2 = tpu.matmul %0, %1, %cst {dimension_numbers = #tpu.dot_dimension_numbers<[1], [0], [0], [1], [0, 0, 1, 1], [], []>} : vector<16x128xf32>, vector<128x1024xf32>, vector<16x1024xf32> -> vector<16x1024xf32>
    %c0_3 = arith.constant 0 : index
    %c0_4 = arith.constant 0 : index
    %3 = vector.load %arg3[%c0_3, %c0_4] : memref<1x1024xf32, #tpu.memory_space<vmem>>, vector<1x1024xf32>
    %4 = vector.broadcast %3 : vector<1x1024xf32> to vector<16x1024xf32>
    %5 = arith.addf %2, %4 : vector<16x1024xf32>
    %cst_5 = arith.constant 0.000000e+00 : f32
    %6 = vector.broadcast %cst_5 : f32 to vector<16x1024xf32>
    %7 = arith.maximumf %5, %6 : vector<16x1024xf32>
    %c0_6 = arith.constant 0 : index
    %c0_7 = arith.constant 0 : index
    %8 = vector.load %arg4[%c0_6, %c0_7] : memref<1024x512xf32, #tpu.memory_space<vmem>>, vector<1024x512xf32>
    %cst_8 = arith.constant dense<0.000000e+00> : vector<16x512xf32>
    %9 = tpu.matmul %7, %8, %cst_8 {dimension_numbers = #tpu.dot_dimension_numbers<[1], [0], [0], [1], [0, 0, 1, 1], [], []>} : vector<16x1024xf32>, vector<1024x512xf32>, vector<16x512xf32> -> vector<16x512xf32>
    %c0_9 = arith.constant 0 : index
    %c0_10 = arith.constant 0 : index
    %10 = vector.load %arg5[%c0_9, %c0_10] : memref<1x512xf32, #tpu.memory_space<vmem>>, vector<1x512xf32>
    %11 = vector.broadcast %10 : vector<1x512xf32> to vector<16x512xf32>
    %12 = arith.addf %9, %11 : vector<16x512xf32>
    %c0_11 = arith.constant 0 : index
    %c0_12 = arith.constant 0 : index
    %13 = vector.load %arg6[%c0_11, %c0_12] : memref<16x512xf32, #tpu.memory_space<vmem>>, vector<16x512xf32>
    tpu.vector_store %arg6[%c0_11, %c0_12], %12 {strides = array<i32>} : memref<16x512xf32, #tpu.memory_space<vmem>>, vector<16x512xf32>,
    return
  }
  func.func @transform_0(%arg0: i32) -> (i32, i32) {
    %c0_i32 = arith.constant 0 : i32
    %c0_i32_0 = arith.constant 0 : i32
    return %arg0, %c0_i32 : i32, i32
  }
  func.func @transform_1(%arg0: i32) -> (i32, i32) {
    %c0_i32 = arith.constant 0 : i32
    %c0_i32_0 = arith.constant 0 : i32
    %c0_i32_1 = arith.constant 0 : i32
    return %c0_i32, %c0_i32_0 : i32, i32
  }
  func.func @transform_2(%arg0: i32) -> (i32, i32) {
    %c0_i32 = arith.constant 0 : i32
    %c0_i32_0 = arith.constant 0 : i32
    %c0_i32_1 = arith.constant 0 : i32
    return %c0_i32, %c0_i32_0 : i32, i32
  }
  func.func @transform_3(%arg0: i32) -> (i32, i32) {
    %c0_i32 = arith.constant 0 : i32
    %c0_i32_0 = arith.constant 0 : i32
    %c0_i32_1 = arith.constant 0 : i32
    return %c0_i32, %c0_i32_0 : i32, i32
  }
  func.func @transform_4(%arg0: i32) -> (i32, i32) {
    %c0_i32 = arith.constant 0 : i32
    %c0_i32_0 = arith.constant 0 : i32
    %c0_i32_1 = arith.constant 0 : i32
    return %c0_i32, %c0_i32_0 : i32, i32
  }
  func.func @transform_5(%arg0: i32) -> (i32, i32) {
    %c0_i32 = arith.constant 0 : i32
    %c0_i32_0 = arith.constant 0 : i32
    return %arg0, %c0_i32 : i32, i32
  }
}

</mosaic_0001>

<llo_original>
// kernel: tpu_custom_call.1
$region0: #{tpu_custom_call.1}
  #allocation0 [shape = 'u32[]', space=smem, size = 0x4, offset = 0x4, fixed_abs, tag = 'smem constant byte address 0x4 - core index']
  #allocation1 [shape = 'u32[144,128]{1,0:T(1,128)}', space=vmem, size = 0x12000, scoped, tag = 'internal scratch']
  %s0 = inlined_call_operand.hbm [shape: f32[16,128], index: 0, kind: input, shape index: {}]
  %s1 = inlined_call_operand.hbm [shape: f32[128,1024], index: 1, kind: input, shape index: {}]
  %s2 = inlined_call_operand.hbm [shape: f32[1,1024], index: 2, kind: input, shape index: {}]
  %s3 = inlined_call_operand.hbm [shape: f32[1024,512], index: 3, kind: input, shape index: {}]
  %s4 = inlined_call_operand.hbm [shape: f32[1,512], index: 4, kind: input, shape index: {}]
  %s5 = inlined_call_operand.hbm [shape: f32[16,512], index: 5, kind: output, shape index: {}]
  %s6 = sld [smem:[#allocation0]]
  $region50: #{tpu_custom_call.1} parent=0
    _
  %s8 = ssub.s32 1, %s6
  %s9 = scalar_select 0, %s8, %s6
  $region1: #{tpu_custom_call.1} parent=0
    #allocation2 [shape = 'u8[8192]{0}', space=vmem, size = 0x2000, scoped, tag = 'input window, operand 0, single buffered']
    #allocation3 [shape = 's32[1]{0}', space=sflag, size = 0x4, scoped, tag = 'scoped memory for tpu_custom_call.1']
    #allocation4 [shape = 's32[1]{0}', space=sflag, size = 0x4, scoped, tag = 'scoped memory for tpu_custom_call.1']
    #allocation5 [shape = 'u8[524288]{0}', space=vmem, size = 0x80000, scoped, tag = 'input window, operand 1, single buffered']
    #allocation6 [shape = 's32[1]{0}', space=sflag, size = 0x4, scoped, tag = 'scoped memory for tpu_custom_call.1']
    #allocation7 [shape = 'u8[4096]{0}', space=vmem, size = 0x1000, scoped, tag = 'input window, operand 2, single buffered']
    #allocation8 [shape = 'u8[2097152]{0}', space=vmem, size = 0x200000, scoped, tag = 'input window, operand 3, single buffered']
    #allocation9 [shape = 's32[1]{0}', space=sflag, size = 0x4, scoped, tag = 'scoped memory for tpu_custom_call.1']
    #allocation10 [shape = 'u8[2048]{0}', space=vmem, size = 0x800, scoped, tag = 'input window, operand 4, single buffered']
    #allocation11 [shape = 'u8[32768]{0}', space=vmem, size = 0x8000, scoped, tag = 'output window, operand 0, single buffered']
    %10 = vsyncpa [#allocation3], 0
    %11 = vsyncpa [#allocation6], 0
    %12 = vsyncpa [#allocation9], 0
    %13 = vsyncpa [#allocation4], 0
    // Predicated region
    $region2: #{tpu_custom_call.1} parent=1 // pred_check
      _
    $region3: #{tpu_custom_call.1} parent=1 // pred_check_branch
      %15 = sbr.rel (0) target = $region5
    $region4: #{tpu_custom_call.1} parent=1 // pred_region
      %s17 = ssub.s32 256, 256
      %18 = vsyncadd [#allocation3], %s17
      %s19 = sshll.u32 [#allocation2], 4
      %s20 = int_to_ptr.vmem [resolvable:$true] %s19
      %25 = dma.hbm_to_vmem [thread:$0]  %s0, 256, %s20, [#allocation3], 128, 128, 8
    $region5: #{tpu_custom_call.1} parent=1 // pred_fallthru
      _
    // Predicated region
    $region6: #{tpu_custom_call.1} parent=1 // pred_check
      _
    $region7: #{tpu_custom_call.1} parent=1 // pred_check_branch
      %27 = sbr.rel (0) target = $region9
    $region8: #{tpu_custom_call.1} parent=1 // pred_region
      %s29 = ssub.s32 16384, 16384
      %30 = vsyncadd [#allocation6], %s29
      %s31 = sshll.u32 [#allocation5], 4
      %s32 = int_to_ptr.vmem [resolvable:$true] %s31
      %37 = dma.hbm_to_vmem [thread:$0]  %s1, 16384, %s32, [#allocation6], 1024, 1024, 64
    $region9: #{tpu_custom_call.1} parent=1 // pred_fallthru
      _
    // Predicated region
    $region10: #{tpu_custom_call.1} parent=1 // pred_check
      _
    $region11: #{tpu_custom_call.1} parent=1 // pred_check_branch
      %39 = sbr.rel (0) target = $region13
    $region12: #{tpu_custom_call.1} parent=1 // pred_region
      %s41 = ssub.s32 128, 128
      %42 = vsyncadd [#allocation6], %s41
      %s44 = sshll.u32 [#allocation7], 4
      %s45 = int_to_ptr.vmem [resolvable:$true] %s44
      %47 = dma.hbm_to_vmem [thread:$0]  %s2, 128, %s45, [#allocation6]
    $region13: #{tpu_custom_call.1} parent=1 // pred_fallthru
      _
    // Predicated region
    $region14: #{tpu_custom_call.1} parent=1 // pred_check
      _
    $region15: #{tpu_custom_call.1} parent=1 // pred_check_branch
      %49 = sbr.rel (0) target = $region17
    $region16: #{tpu_custom_call.1} parent=1 // pred_region
      %s51 = ssub.s32 65536, 65536
      %52 = vsyncadd [#allocation9], %s51
      %s53 = sshll.u32 [#allocation8], 4
      %s54 = int_to_ptr.vmem [resolvable:$true] %s53
      %59 = dma.hbm_to_vmem [thread:$0]  %s3, 65536, %s54, [#allocation9], 512, 512, 32
    $region17: #{tpu_custom_call.1} parent=1 // pred_fallthru
      _
    // Predicated region
    $region18: #{tpu_custom_call.1} parent=1 // pred_check
      _
    $region19: #{tpu_custom_call.1} parent=1 // pred_check_branch
      %61 = sbr.rel (0) target = $region21
    $region20: #{tpu_custom_call.1} parent=1 // pred_region
      %s63 = ssub.s32 64, 64
      %64 = vsyncadd [#allocation9], %s63
      %s66 = sshll.u32 [#allocation10], 4
      %s67 = int_to_ptr.vmem [resolvable:$true] %s66
      %69 = dma.hbm_to_vmem [thread:$0]  %s4, 64, %s67, [#allocation9]
    $region21: #{tpu_custom_call.1} parent=1 // pred_fallthru
      _
    // Predicated region
    $region22: #{tpu_custom_call.1} parent=1 // pred_check
      _
    $region23: #{tpu_custom_call.1} parent=1 // pred_check_branch
      %71 = sbr.rel (0) target = $region25
    $region24: #{tpu_custom_call.1} parent=1 // pred_region
      %72 = dma.done [#allocation3], 256
    $region25: #{tpu_custom_call.1} parent=1 // pred_fallthru
      _
    // Predicated region
    $region26: #{tpu_custom_call.1} parent=1 // pred_check
      _
    $region27: #{tpu_custom_call.1} parent=1 // pred_check_branch
      %74 = sbr.rel (0) target = $region29
    $region28: #{tpu_custom_call.1} parent=1 // pred_region
      %75 = dma.done [#allocation6], 16384
    $region29: #{tpu_custom_call.1} parent=1 // pred_fallthru
      _
    // Predicated region
    $region30: #{tpu_custom_call.1} parent=1 // pred_check
      _
    $region31: #{tpu_custom_call.1} parent=1 // pred_check_branch
      %77 = sbr.rel (0) target = $region33
    $region32: #{tpu_custom_call.1} parent=1 // pred_region
      %78 = dma.done [#allocation6], 128
    $region33: #{tpu_custom_call.1} parent=1 // pred_fallthru
      _
    // Predicated region
    $region34: #{tpu_custom_call.1} parent=1 // pred_check
      _
    $region35: #{tpu_custom_call.1} parent=1 // pred_check_branch
      %80 = sbr.rel (0) target = $region37
    $region36: #{tpu_custom_call.1} parent=1 // pred_region
      %81 = dma.done [#allocation9], 65536
    $region37: #{tpu_custom_call.1} parent=1 // pred_fallthru
      _
    // Predicated region
    $region38: #{tpu_custom_call.1} parent=1 // pred_check
      _
    $region39: #{tpu_custom_call.1} parent=1 // pred_check_branch
      %83 = sbr.rel (0) target = $region41
    $region40: #{tpu_custom_call.1} parent=1 // pred_region
      %84 = dma.done [#allocation9], 64
    $region41: #{tpu_custom_call.1} parent=1 // pred_fallthru
      _
    %v85 = vld [vmem:[#allocation2] sm:$0xff]
    %v86 = vld [vmem:[#allocation2 + $0x8] sm:$0xff]
    %v87 = vld [vmem:[#allocation5] sm:$0xff]
    %v88 = vld [vmem:[#allocation5 + $0x8] sm:$0xff]
    %v89 = vld [vmem:[#allocation5 + $0x10] sm:$0xff]
    %v90 = vld [vmem:[#allocation5 + $0x18] sm:$0xff]
    %v91 = vld [vmem:[#allocation5 + $0x20] sm:$0xff]
    %v92 = vld [vmem:[#allocation5 + $0x28] sm:$0xff]
    %v93 = vld [vmem:[#allocation5 + $0x30] sm:$0xff]
    %v94 = vld [vmem:[#allocation5 + $0x38] sm:$0xff]
    %v95 = vld [vmem:[#allocation5 + $0x40] sm:$0xff]
    %v96 = vld [vmem:[#allocation5 + $0x48] sm:$0xff]
    %v97 = vld [vmem:[#allocation5 + $0x50] sm:$0xff]
    %v98 = vld [vmem:[#allocation5 + $0x58] sm:$0xff]
    %v99 = vld [vmem:[#allocation5 + $0x60] sm:$0xff]
    %v100 = vld [vmem:[#allocation5 + $0x68] sm:$0xff]
    %v101 = vld [vmem:[#allocation5 + $0x70] sm:$0xff]
    %v102 = vld [vmem:[#allocation5 + $0x78] sm:$0xff]
    %v103 = vld [vmem:[#allocation5 + $0x80] sm:$0xff]
    %v104 = vld [vmem:[#allocation5 + $0x88] sm:$0xff]
    %v105 = vld [vmem:[#allocation5 + $0x90] sm:$0xff]
    %v106 = vld [vmem:[#allocation5 + $0x98] sm:$0xff]
    %v107 = vld [vmem:[#allocation5 + $0xa0] sm:$0xff]
    %v108 = vld [vmem:[#allocation5 + $0xa8] sm:$0xff]
    %v109 = vld [vmem:[#allocation5 + $0xb0] sm:$0xff]
    %v110 = vld [vmem:[#allocation5 + $0xb8] sm:$0xff]
    %v111 = vld [vmem:[#allocation5 + $0xc0] sm:$0xff]
    %v112 = vld [vmem:[#allocation5 + $0xc8] sm:$0xff]
    %v113 = vld [vmem:[#allocation5 + $0xd0] sm:$0xff]
    %v114 = vld [vmem:[#allocation5 + $0xd8] sm:$0xff]
    %v115 = vld [vmem:[#allocation5 + $0xe0] sm:$0xff]
    %v116 = vld [vmem:[#allocation5 + $0xe8] sm:$0xff]
    %v117 = vld [vmem:[#allocation5 + $0xf0] sm:$0xff]
    %v118 = vld [vmem:[#allocation5 + $0xf8] sm:$0xff]
    %v119 = vld [vmem:[#allocation5 + $0x100] sm:$0xff]
    %v120 = vld [vmem:[#allocation5 + $0x108] sm:$0xff]
    %v121 = vld [vmem:[#allocation5 + $0x110] sm:$0xff]
    %v122 = vld [vmem:[#allocation5 + $0x118] sm:$0xff]
    %v123 = vld [vmem:[#allocation5 + $0x120] sm:$0xff]
    %v124 = vld [vmem:[#allocation5 + $0x128] sm:$0xff]
    %v125 = vld [vmem:[#allocation5 + $0x130] sm:$0xff]
    %v126 = vld [vmem:[#allocation5 + $0x138] sm:$0xff]
    %v127 = vld [vmem:[#allocation5 + $0x140] sm:$0xff]
    %v128 = vld [vmem:[#allocation5 + $0x148] sm:$0xff]
    %v129 = vld [vmem:[#allocation5 + $0x150] sm:$0xff]
    %v130 = vld [vmem:[#allocation5 + $0x158] sm:$0xff]
    %v131 = vld [vmem:[#allocation5 + $0x160] sm:$0xff]
    %v132 = vld [vmem:[#allocation5 + $0x168] sm:$0xff]
    %v133 = vld [vmem:[#allocation5 + $0x170] sm:$0xff]
    %v134 = vld [vmem:[#allocation5 + $0x178] sm:$0xff]
    %v135 = vld [vmem:[#allocation5 + $0x180] sm:$0xff]
    %v136 = vld [vmem:[#allocation5 + $0x188] sm:$0xff]
    %v137 = vld [vmem:[#allocation5 + $0x190] sm:$0xff]
    %v138 = vld [vmem:[#allocation5 + $0x198] sm:$0xff]
    %v139 = vld [vmem:[#allocation5 + $0x1a0] sm:$0xff]
    %v140 = vld [vmem:[#allocation5 + $0x1a8] sm:$0xff]
    %v141 = vld [vmem:[#allocation5 + $0x1b0] sm:$0xff]
    %v142 = vld [vmem:[#allocation5 + $0x1b8] sm:$0xff]
    %v143 = vld [vmem:[#allocation5 + $0x1c0] sm:$0xff]
    %v144 = vld [vmem:[#allocation5 + $0x1c8] sm:$0xff]
    %v145 = vld [vmem:[#allocation5 + $0x1d0] sm:$0xff]
    %v146 = vld [vmem:[#allocation5 + $0x1d8] sm:$0xff]
    %v147 = vld [vmem:[#allocation5 + $0x1e0] sm:$0xff]
    %v148 = vld [vmem:[#allocation5 + $0x1e8] sm:$0xff]
    %v149 = vld [vmem:[#allocation5 + $0x1f0] sm:$0xff]
    %v150 = vld [vmem:[#allocation5 + $0x1f8] sm:$0xff]
    %v151 = vld [vmem:[#allocation5 + $0x200] sm:$0xff]
    %v152 = vld [vmem:[#allocation5 + $0x208] sm:$0xff]
    %v153 = vld [vmem:[#allocation5 + $0x210] sm:$0xff]
    %v154 = vld [vmem:[#allocation5 + $0x218] sm:$0xff]
    %v155 = vld [vmem:[#allocation5 + $0x220] sm:$0xff]
    %v156 = vld [vmem:[#allocation5 + $0x228] sm:$0xff]
    %v157 = vld [vmem:[#allocation5 + $0x230] sm:$0xff]
    %v158 = vld [vmem:[#allocation5 + $0x238] sm:$0xff]
    %v159 = vld [vmem:[#allocation5 + $0x240] sm:$0xff]
    %v160 = vld [vmem:[#allocation5 + $0x248] sm:$0xff]
    %v161 = vld [vmem:[#allocation5 + $0x250] sm:$0xff]
    %v162 = vld [vmem:[#allocation5 + $0x258] sm:$0xff]
    %v163 = vld [vmem:[#allocation5 + $0x260] sm:$0xff]
    %v164 = vld [vmem:[#allocation5 + $0x268] sm:$0xff]
    %v165 = vld [vmem:[#allocation5 + $0x270] sm:$0xff]
    %v166 = vld [vmem:[#allocation5 + $0x278] sm:$0xff]
    %v167 = vld [vmem:[#allocation5 + $0x280] sm:$0xff]
    %v168 = vld [vmem:[#allocation5 + $0x288] sm:$0xff]
    %v169 = vld [vmem:[#allocation5 + $0x290] sm:$0xff]
    %v170 = vld [vmem:[#allocation5 + $0x298] sm:$0xff]
    %v171 = vld [vmem:[#allocation5 + $0x2a0] sm:$0xff]
    %v172 = vld [vmem:[#allocation5 + $0x2a8] sm:$0xff]
    %v173 = vld [vmem:[#allocation5 + $0x2b0] sm:$0xff]
    %v174 = vld [vmem:[#allocation5 + $0x2b8] sm:$0xff]
    %v175 = vld [vmem:[#allocation5 + $0x2c0] sm:$0xff]
    %v176 = vld [vmem:[#allocation5 + $0x2c8] sm:$0xff]
    %v177 = vld [vmem:[#allocation5 + $0x2d0] sm:$0xff]
    %v178 = vld [vmem:[#allocation5 + $0x2d8] sm:$0xff]
    %v179 = vld [vmem:[#allocation5 + $0x2e0] sm:$0xff]
    %v180 = vld [vmem:[#allocation5 + $0x2e8] sm:$0xff]
    %v181 = vld [vmem:[#allocation5 + $0x2f0] sm:$0xff]
    %v182 = vld [vmem:[#allocation5 + $0x2f8] sm:$0xff]
    %v183 = vld [vmem:[#allocation5 + $0x300] sm:$0xff]
    %v184 = vld [vmem:[#allocation5 + $0x308] sm:$0xff]
    %v185 = vld [vmem:[#allocation5 + $0x310] sm:$0xff]
    %v186 = vld [vmem:[#allocation5 + $0x318] sm:$0xff]
    %v187 = vld [vmem:[#allocation5 + $0x320] sm:$0xff]
    %v188 = vld [vmem:[#allocation5 + $0x328] sm:$0xff]
    %v189 = vld [vmem:[#allocation5 + $0x330] sm:$0xff]
    %v190 = vld [vmem:[#allocation5 + $0x338] sm:$0xff]
    %v191 = vld [vmem:[#allocation5 + $0x340] sm:$0xff]
    %v192 = vld [vmem:[#allocation5 + $0x348] sm:$0xff]
    %v193 = vld [vmem:[#allocation5 + $0x350] sm:$0xff]
    %v194 = vld [vmem:[#allocation5 + $0x358] sm:$0xff]
    %v195 = vld [vmem:[#allocation5 + $0x360] sm:$0xff]
    %v196 = vld [vmem:[#allocation5 + $0x368] sm:$0xff]
    %v197 = vld [vmem:[#allocation5 + $0x370] sm:$0xff]
    %v198 = vld [vmem:[#allocation5 + $0x378] sm:$0xff]
    %v199 = vld [vmem:[#allocation5 + $0x380] sm:$0xff]
    %v200 = vld [vmem:[#allocation5 + $0x388] sm:$0xff]
    %v201 = vld [vmem:[#allocation5 + $0x390] sm:$0xff]
    %v202 = vld [vmem:[#allocation5 + $0x398] sm:$0xff]
    %v203 = vld [vmem:[#allocation5 + $0x3a0] sm:$0xff]
    %v204 = vld [vmem:[#allocation5 + $0x3a8] sm:$0xff]
    %v205 = vld [vmem:[#allocation5 + $0x3b0] sm:$0xff]
    %v206 = vld [vmem:[#allocation5 + $0x3b8] sm:$0xff]
    %v207 = vld [vmem:[#allocation5 + $0x3c0] sm:$0xff]
    %v208 = vld [vmem:[#allocation5 + $0x3c8] sm:$0xff]
    %v209 = vld [vmem:[#allocation5 + $0x3d0] sm:$0xff]
    %v210 = vld [vmem:[#allocation5 + $0x3d8] sm:$0xff]
    %v211 = vld [vmem:[#allocation5 + $0x3e0] sm:$0xff]
    %v212 = vld [vmem:[#allocation5 + $0x3e8] sm:$0xff]
    %v213 = vld [vmem:[#allocation5 + $0x3f0] sm:$0xff]
    %v214 = vld [vmem:[#allocation5 + $0x3f8] sm:$0xff]
    %v215 = vld [vmem:[#allocation7] sm:$0xff]
    %v217 = vlaneseq
    %v218 = vshrl.u32 %v217, 7
    %v219 = vsub.s32 0, %v218
    %v220 = vrot.slane %v215, %v219
    %v221 = vlaneseq
    %v222 = vshrl.u32 %v221, 7
    %v223 = vsub.s32 1, %v222
    %v224 = vrot.slane %v215, %v223
    %v225 = vlaneseq
    %v226 = vshrl.u32 %v225, 7
    %v227 = vsub.s32 2, %v226
    %v228 = vrot.slane %v215, %v227
    %v229 = vlaneseq
    %v230 = vshrl.u32 %v229, 7
    %v231 = vsub.s32 3, %v230
    %v232 = vrot.slane %v215, %v231
    %v233 = vlaneseq
    %v234 = vshrl.u32 %v233, 7
    %v235 = vsub.s32 4, %v234
    %v236 = vrot.slane %v215, %v235
    %v237 = vlaneseq
    %v238 = vshrl.u32 %v237, 7
    %v239 = vsub.s32 5, %v238
    %v240 = vrot.slane %v215, %v239
    %v241 = vlaneseq
    %v242 = vshrl.u32 %v241, 7
    %v243 = vsub.s32 6, %v242
    %v244 = vrot.slane %v215, %v243
    %v245 = vlaneseq
    %v246 = vshrl.u32 %v245, 7
    %v247 = vsub.s32 7, %v246
    %v248 = vrot.slane %v215, %v247
    %257 = vmatprep.subr.mxu0 %v208
    %258 = vmatpush1.msra.mxu0 %v207
    %259 = vmatprep.subr.mxu0 %v200
    %260 = vmatpush1.msra.mxu0 %v199
    %261 = vmatprep.subr.mxu0 %v192
    %262 = vmatpush1.msra.mxu0 %v191
    %263 = vmatprep.subr.mxu0 %v184
    %264 = vmatpush1.msra.mxu0 %v183
    %265 = vmatprep.subr.mxu0 %v176
    %266 = vmatpush1.msra.mxu0 %v175
    %267 = vmatprep.subr.mxu0 %v168
    %268 = vmatpush1.msra.mxu0 %v167
    %269 = vmatprep.subr.mxu0 %v160
    %270 = vmatpush1.msra.mxu0 %v159
    %271 = vmatprep.subr.mxu0 %v152
    %272 = vmatpush1.msra.mxu0 %v151
    %273 = vmatprep.subr.mxu0 %v144
    %274 = vmatpush1.msra.mxu0 %v143
    %275 = vmatprep.subr.mxu0 %v136
    %276 = vmatpush1.msra.mxu0 %v135
    %277 = vmatprep.subr.mxu0 %v128
    %278 = vmatpush1.msra.mxu0 %v127
    %279 = vmatprep.subr.mxu0 %v120
    %280 = vmatpush1.msra.mxu0 %v119
    %281 = vmatprep.subr.mxu0 %v112
    %282 = vmatpush1.msra.mxu0 %v111
    %283 = vmatprep.subr.mxu0 %v104
    %284 = vmatpush1.msra.mxu0 %v103
    %285 = vmatprep.subr.mxu0 %v96
    %286 = vmatpush1.msra.mxu0 %v95
    %287 = vmatprep.subr.mxu0 %v88
    %288 = vmatpush1.msra.mxu0 %v87
    %289 = vmatprep.subr.mxu0 0.0
    %290 = vmatpush2.msra.mxu0 0.0
    %291 = vmatprep.subr.mxu0 0.0
    %292 = vmatpush2.msra.mxu0 0.0
    %293 = vmatprep.subr.mxu0 0.0
    %294 = vmatpush2.msra.mxu0 0.0
    %295 = vmatprep.subr.mxu0 0.0
    %296 = vmatpush2.msra.mxu0 0.0
    %297 = vmatprep.subr.mxu0 0.0
    %298 = vmatpush2.msra.mxu0 0.0
    %299 = vmatprep.subr.mxu0 0.0
    %300 = vmatpush2.msra.mxu0 0.0
    %301 = vmatprep.subr.mxu0 0.0
    %302 = vmatpush2.msra.mxu0 0.0
    %303 = vmatprep.subr.mxu0 0.0
    %304 = vmatpush2.msra.mxu0 0.0
    %305 = vmatprep.subr.mxu0 0.0
    %306 = vmatpush2.msra.mxu0 0.0
    %307 = vmatprep.subr.mxu0 0.0
    %308 = vmatpush2.msra.mxu0 0.0
    %309 = vmatprep.subr.mxu0 0.0
    %310 = vmatpush2.msra.mxu0 0.0
    %311 = vmatprep.subr.mxu0 0.0
    %312 = vmatpush2.msra.mxu0 0.0
    %313 = vmatprep.subr.mxu0 0.0
    %314 = vmatpush2.msra.mxu0 0.0
    %315 = vmatprep.subr.mxu0 0.0
    %316 = vmatpush2.msra.mxu0 0.0
    %317 = vmatprep.subr.mxu0 0.0
    %318 = vmatpush2.msra.mxu0 0.0
    %319 = vmatprep.subr.mxu0 0.0
    %320 = vmatpush2.msra.mxu0 0.0
    %321 = vmatprep.mubr.f32.mxu0 0.0
    %322 = vmatmul.mubr.f32.gmra.mxu0 %v85
    %v323 = vpop.f32.mrf.mxu0
    %v324 = vadd.f32 %v220, %v323
    %v325 = vpop.f32.mrf.mxu0
    %v326 = vadd.f32 %v224, %v325
    %327 = vmatprep.mubr.f32.mxu0 0.0
    %328 = vmatmul.mubr.f32.gmra.mxu0 %v86
    %v329 = vpop.f32.mrf.mxu0
    %v330 = vadd.f32 %v220, %v329
    %v331 = vpop.f32.mrf.mxu0
    %v332 = vadd.f32 %v224, %v331
    %333 = vdwg.mxu0
    %334 = vmatprep.subr.mxu0 %v210
    %335 = vmatpush1.msra.mxu0 %v209
    %336 = vmatprep.subr.mxu0 %v202
    %337 = vmatpush1.msra.mxu0 %v201
    %338 = vmatprep.subr.mxu0 %v194
    %339 = vmatpush1.msra.mxu0 %v193
    %340 = vmatprep.subr.mxu0 %v186
    %341 = vmatpush1.msra.mxu0 %v185
    %342 = vmatprep.subr.mxu0 %v178
    %343 = vmatpush1.msra.mxu0 %v177
    %344 = vmatprep.subr.mxu0 %v170
    %345 = vmatpush1.msra.mxu0 %v169
    %346 = vmatprep.subr.mxu0 %v162
    %347 = vmatpush1.msra.mxu0 %v161
    %348 = vmatprep.subr.mxu0 %v154
    %349 = vmatpush1.msra.mxu0 %v153
    %350 = vmatprep.subr.mxu0 %v146
    %351 = vmatpush1.msra.mxu0 %v145
    %352 = vmatprep.subr.mxu0 %v138
    %353 = vmatpush1.msra.mxu0 %v137
    %354 = vmatprep.subr.mxu0 %v130
    %355 = vmatpush1.msra.mxu0 %v129
    %356 = vmatprep.subr.mxu0 %v122
    %357 = vmatpush1.msra.mxu0 %v121
    %358 = vmatprep.subr.mxu0 %v114
    %359 = vmatpush1.msra.mxu0 %v113
    %360 = vmatprep.subr.mxu0 %v106
    %361 = vmatpush1.msra.mxu0 %v105
    %362 = vmatprep.subr.mxu0 %v98
    %363 = vmatpush1.msra.mxu0 %v97
    %364 = vmatprep.subr.mxu0 %v90
    %365 = vmatpush1.msra.mxu0 %v89
    %366 = vmatprep.subr.mxu0 0.0
    %367 = vmatpush2.msra.mxu0 0.0
    %368 = vmatprep.subr.mxu0 0.0
    %369 = vmatpush2.msra.mxu0 0.0
    %370 = vmatprep.subr.mxu0 0.0
    %371 = vmatpush2.msra.mxu0 0.0
    %372 = vmatprep.subr.mxu0 0.0
    %373 = vmatpush2.msra.mxu0 0.0
    %374 = vmatprep.subr.mxu0 0.0
    %375 = vmatpush2.msra.mxu0 0.0
    %376 = vmatprep.subr.mxu0 0.0
    %377 = vmatpush2.msra.mxu0 0.0
    %378 = vmatprep.subr.mxu0 0.0
    %379 = vmatpush2.msra.mxu0 0.0
    %380 = vmatprep.subr.mxu0 0.0
    %381 = vmatpush2.msra.mxu0 0.0
    %382 = vmatprep.subr.mxu0 0.0
    %383 = vmatpush2.msra.mxu0 0.0
    %384 = vmatprep.subr.mxu0 0.0
    %385 = vmatpush2.msra.mxu0 0.0
    %386 = vmatprep.subr.mxu0 0.0
    %387 = vmatpush2.msra.mxu0 0.0
    %388 = vmatprep.subr.mxu0 0.0
    %389 = vmatpush2.msra.mxu0 0.0
    %390 = vmatprep.subr.mxu0 0.0
    %391 = vmatpush2.msra.mxu0 0.0
    %392 = vmatprep.subr.mxu0 0.0
    %393 = vmatpush2.msra.mxu0 0.0
    %394 = vmatprep.subr.mxu0 0.0
    %395 = vmatpush2.msra.mxu0 0.0
    %396 = vmatprep.subr.mxu0 0.0
    %397 = vmatpush2.msra.mxu0 0.0
    %398 = vmatprep.mubr.f32.mxu0 0.0
    %399 = vmatmul.mubr.f32.gmra.mxu0 %v85
    %v400 = vpop.f32.mrf.mxu0
    %v401 = vadd.f32 %v228, %v400
    %v402 = vpop.f32.mrf.mxu0
    %v403 = vadd.f32 %v232, %v402
    %404 = vmatprep.mubr.f32.mxu0 0.0
    %405 = vmatmul.mubr.f32.gmra.mxu0 %v86
    %v406 = vpop.f32.mrf.mxu0
    %v407 = vadd.f32 %v228, %v406
    %v408 = vpop.f32.mrf.mxu0
    %v409 = vadd.f32 %v232, %v408
    %410 = vdwg.mxu0
    %411 = vmatprep.subr.mxu0 %v212
    %412 = vmatpush1.msra.mxu0 %v211
    %413 = vmatprep.subr.mxu0 %v204
    %414 = vmatpush1.msra.mxu0 %v203
    %415 = vmatprep.subr.mxu0 %v196
    %416 = vmatpush1.msra.mxu0 %v195
    %417 = vmatprep.subr.mxu0 %v188
    %418 = vmatpush1.msra.mxu0 %v187
    %419 = vmatprep.subr.mxu0 %v180
    %420 = vmatpush1.msra.mxu0 %v179
    %421 = vmatprep.subr.mxu0 %v172
    %422 = vmatpush1.msra.mxu0 %v171
    %423 = vmatprep.subr.mxu0 %v164
    %424 = vmatpush1.msra.mxu0 %v163
    %425 = vmatprep.subr.mxu0 %v156
    %426 = vmatpush1.msra.mxu0 %v155
    %427 = vmatprep.subr.mxu0 %v148
    %428 = vmatpush1.msra.mxu0 %v147
    %429 = vmatprep.subr.mxu0 %v140
    %430 = vmatpush1.msra.mxu0 %v139
    %431 = vmatprep.subr.mxu0 %v132
    %432 = vmatpush1.msra.mxu0 %v131
    %433 = vmatprep.subr.mxu0 %v124
    %434 = vmatpush1.msra.mxu0 %v123
    %435 = vmatprep.subr.mxu0 %v116
    %436 = vmatpush1.msra.mxu0 %v115
    %437 = vmatprep.subr.mxu0 %v108
    %438 = vmatpush1.msra.mxu0 %v107
    %439 = vmatprep.subr.mxu0 %v100
    %440 = vmatpush1.msra.mxu0 %v99
    %441 = vmatprep.subr.mxu0 %v92
    %442 = vmatpush1.msra.mxu0 %v91
    %443 = vmatprep.subr.mxu0 0.0
    %444 = vmatpush2.msra.mxu0 0.0
    %445 = vmatprep.subr.mxu0 0.0
    %446 = vmatpush2.msra.mxu0 0.0
    %447 = vmatprep.subr.mxu0 0.0
    %448 = vmatpush2.msra.mxu0 0.0
    %449 = vmatprep.subr.mxu0 0.0
    %450 = vmatpush2.msra.mxu0 0.0
    %451 = vmatprep.subr.mxu0 0.0
    %452 = vmatpush2.msra.mxu0 0.0
    %453 = vmatprep.subr.mxu0 0.0
    %454 = vmatpush2.msra.mxu0 0.0
    %455 = vmatprep.subr.mxu0 0.0
    %456 = vmatpush2.msra.mxu0 0.0
    %457 = vmatprep.subr.mxu0 0.0
    %458 = vmatpush2.msra.mxu0 0.0
    %459 = vmatprep.subr.mxu0 0.0
    %460 = vmatpush2.msra.mxu0 0.0
    %461 = vmatprep.subr.mxu0 0.0
    %462 = vmatpush2.msra.mxu0 0.0
    %463 = vmatprep.subr.mxu0 0.0
    %464 = vmatpush2.msra.mxu0 0.0
    %465 = vmatprep.subr.mxu0 0.0
    %466 = vmatpush2.msra.mxu0 0.0
    %467 = vmatprep.subr.mxu0 0.0
    %468 = vmatpush2.msra.mxu0 0.0
    %469 = vmatprep.subr.mxu0 0.0
    %470 = vmatpush2.msra.mxu0 0.0
    %471 = vmatprep.subr.mxu0 0.0
    %472 = vmatpush2.msra.mxu0 0.0
    %473 = vmatprep.subr.mxu0 0.0
    %474 = vmatpush2.msra.mxu0 0.0
    %475 = vmatprep.mubr.f32.mxu0 0.0
    %476 = vmatmul.mubr.f32.gmra.mxu0 %v85
    %v477 = vpop.f32.mrf.mxu0
    %v478 = vadd.f32 %v236, %v477
    %v479 = vpop.f32.mrf.mxu0
    %v480 = vadd.f32 %v240, %v479
    %481 = vmatprep.mubr.f32.mxu0 0.0
    %482 = vmatmul.mubr.f32.gmra.mxu0 %v86
    %v483 = vpop.f32.mrf.mxu0
    %v484 = vadd.f32 %v236, %v483
    %v485 = vpop.f32.mrf.mxu0
    %v486 = vadd.f32 %v240, %v485
    %487 = vdwg.mxu0
    %488 = vmatprep.subr.mxu0 %v214
    %489 = vmatpush1.msra.mxu0 %v213
    %490 = vmatprep.subr.mxu0 %v206
    %491 = vmatpush1.msra.mxu0 %v205
    %492 = vmatprep.subr.mxu0 %v198
    %493 = vmatpush1.msra.mxu0 %v197
    %494 = vmatprep.subr.mxu0 %v190
    %495 = vmatpush1.msra.mxu0 %v189
    %496 = vmatprep.subr.mxu0 %v182
    %497 = vmatpush1.msra.mxu0 %v181
    %498 = vmatprep.subr.mxu0 %v174
    %499 = vmatpush1.msra.mxu0 %v173
    %500 = vmatprep.subr.mxu0 %v166
    %501 = vmatpush1.msra.mxu0 %v165
    %502 = vmatprep.subr.mxu0 %v158
    %503 = vmatpush1.msra.mxu0 %v157
    %504 = vmatprep.subr.mxu0 %v150
    %505 = vmatpush1.msra.mxu0 %v149
    %506 = vmatprep.subr.mxu0 %v142
    %507 = vmatpush1.msra.mxu0 %v141
    %508 = vmatprep.subr.mxu0 %v134
    %509 = vmatpush1.msra.mxu0 %v133
    %510 = vmatprep.subr.mxu0 %v126
    %511 = vmatpush1.msra.mxu0 %v125
    %512 = vmatprep.subr.mxu0 %v118
    %513 = vmatpush1.msra.mxu0 %v117
    %514 = vmatprep.subr.mxu0 %v110
    %515 = vmatpush1.msra.mxu0 %v109
    %516 = vmatprep.subr.mxu0 %v102
    %517 = vmatpush1.msra.mxu0 %v101
    %518 = vmatprep.subr.mxu0 %v94
    %519 = vmatpush1.msra.mxu0 %v93
    %520 = vmatprep.subr.mxu0 0.0
    %521 = vmatpush2.msra.mxu0 0.0
    %522 = vmatprep.subr.mxu0 0.0
    %523 = vmatpush2.msra.mxu0 0.0
    %524 = vmatprep.subr.mxu0 0.0
    %525 = vmatpush2.msra.mxu0 0.0
    %526 = vmatprep.subr.mxu0 0.0
    %527 = vmatpush2.msra.mxu0 0.0
    %528 = vmatprep.subr.mxu0 0.0
    %529 = vmatpush2.msra.mxu0 0.0
    %530 = vmatprep.subr.mxu0 0.0
    %531 = vmatpush2.msra.mxu0 0.0
    %532 = vmatprep.subr.mxu0 0.0
    %533 = vmatpush2.msra.mxu0 0.0
    %534 = vmatprep.subr.mxu0 0.0
    %535 = vmatpush2.msra.mxu0 0.0
    %536 = vmatprep.subr.mxu0 0.0
    %537 = vmatpush2.msra.mxu0 0.0
    %538 = vmatprep.subr.mxu0 0.0
    %539 = vmatpush2.msra.mxu0 0.0
    %540 = vmatprep.subr.mxu0 0.0
    %541 = vmatpush2.msra.mxu0 0.0
    %542 = vmatprep.subr.mxu0 0.0
    %543 = vmatpush2.msra.mxu0 0.0
    %544 = vmatprep.subr.mxu0 0.0
    %545 = vmatpush2.msra.mxu0 0.0
    %546 = vmatprep.subr.mxu0 0.0
    %547 = vmatpush2.msra.mxu0 0.0
    %548 = vmatprep.subr.mxu0 0.0
    %549 = vmatpush2.msra.mxu0 0.0
    %550 = vmatprep.subr.mxu0 0.0
    %551 = vmatpush2.msra.mxu0 0.0
    %552 = vmatprep.mubr.f32.mxu0 0.0
    %553 = vmatmul.mubr.f32.gmra.mxu0 %v85
    %v554 = vpop.f32.mrf.mxu0
    %v555 = vadd.f32 %v244, %v554
    %v556 = vpop.f32.mrf.mxu0
    %v557 = vadd.f32 %v248, %v556
    %558 = vmatprep.mubr.f32.mxu0 0.0
    %559 = vmatmul.mubr.f32.gmra.mxu0 %v86
    %v560 = vpop.f32.mrf.mxu0
    %v561 = vadd.f32 %v244, %v560
    %v562 = vpop.f32.mrf.mxu0
    %v563 = vadd.f32 %v248, %v562
    %564 = vdwg.mxu0
    %v565 = vmax.f32 %v324, 0.0
    %v566 = vmax.f32 %v326, 0.0
    %v567 = vmax.f32 %v401, 0.0
    %v568 = vmax.f32 %v403, 0.0
    %v569 = vmax.f32 %v478, 0.0
    %v570 = vmax.f32 %v480, 0.0
    %v571 = vmax.f32 %v555, 0.0
    %v572 = vmax.f32 %v557, 0.0
    %v573 = vmax.f32 %v330, 0.0
    %v574 = vmax.f32 %v332, 0.0
    %v575 = vmax.f32 %v407, 0.0
    %v576 = vmax.f32 %v409, 0.0
    %v577 = vmax.f32 %v484, 0.0
    %v578 = vmax.f32 %v486, 0.0
    %v579 = vmax.f32 %v561, 0.0
    %v580 = vmax.f32 %v563, 0.0
    %v581 = vld [vmem:[#allocation8] sm:$0xff]
    %v582 = vld [vmem:[#allocation8 + $0x8] sm:$0xff]
    %v583 = vld [vmem:[#allocation8 + $0x10] sm:$0xff]
    %v584 = vld [vmem:[#allocation8 + $0x18] sm:$0xff]
    %v585 = vld [vmem:[#allocation8 + $0x20] sm:$0xff]
    %v586 = vld [vmem:[#allocation8 + $0x28] sm:$0xff]
    %v587 = vld [vmem:[#allocation8 + $0x30] sm:$0xff]
    %v588 = vld [vmem:[#allocation8 + $0x38] sm:$0xff]
    %v589 = vld [vmem:[#allocation8 + $0x40] sm:$0xff]
    %v590 = vld [vmem:[#allocation8 + $0x48] sm:$0xff]
    %v591 = vld [vmem:[#allocation8 + $0x50] sm:$0xff]
    %v592 = vld [vmem:[#allocation8 + $0x58] sm:$0xff]
    %v593 = vld [vmem:[#allocation8 + $0x60] sm:$0xff]
    %v594 = vld [vmem:[#allocation8 + $0x68] sm:$0xff]
    %v595 = vld [vmem:[#allocation8 + $0x70] sm:$0xff]
    %v596 = vld [vmem:[#allocation8 + $0x78] sm:$0xff]
    %v597 = vld [vmem:[#allocation8 + $0x80] sm:$0xff]
    %v598 = vld [vmem:[#allocation8 + $0x88] sm:$0xff]
    %v599 = vld [vmem:[#allocation8 + $0x90] sm:$0xff]
    %v600 = vld [vmem:[#allocation8 + $0x98] sm:$0xff]
    %v601 = vld [vmem:[#allocation8 + $0xa0] sm:$0xff]
    %v602 = vld [vmem:[#allocation8 + $0xa8] sm:$0xff]
    %v603 = vld [vmem:[#allocation8 + $0xb0] sm:$0xff]
    %v604 = vld [vmem:[#allocation8 + $0xb8] sm:$0xff]
    %v605 = vld [vmem:[#allocation8 + $0xc0] sm:$0xff]
    %v606 = vld [vmem:[#allocation8 + $0xc8] sm:$0xff]
    %v607 = vld [vmem:[#allocation8 + $0xd0] sm:$0xff]
    %v608 = vld [vmem:[#allocation8 + $0xd8] sm:$0xff]
    %v609 = vld [vmem:[#allocation8 + $0xe0] sm:$0xff]
    %v610 = vld [vmem:[#allocation8 + $0xe8] sm:$0xff]
    %v611 = vld [vmem:[#allocation8 + $0xf0] sm:$0xff]
    %v612 = vld [vmem:[#allocation8 + $0xf8] sm:$0xff]
    %v613 = vld [vmem:[#allocation8 + $0x100] sm:$0xff]
    %v614 = vld [vmem:[#allocation8 + $0x108] sm:$0xff]
    %v615 = vld [vmem:[#allocation8 + $0x110] sm:$0xff]
    %v616 = vld [vmem:[#allocation8 + $0x118] sm:$0xff]
    %v617 = vld [vmem:[#allocation8 + $0x120] sm:$0xff]
    %v618 = vld [vmem:[#allocation8 + $0x128] sm:$0xff]
    %v619 = vld [vmem:[#allocation8 + $0x130] sm:$0xff]
    %v620 = vld [vmem:[#allocation8 + $0x138] sm:$0xff]
    %v621 = vld [vmem:[#allocation8 + $0x140] sm:$0xff]
    %v622 = vld [vmem:[#allocation8 + $0x148] sm:$0xff]
    %v623 = vld [vmem:[#allocation8 + $0x150] sm:$0xff]
    %v624 = vld [vmem:[#allocation8 + $0x158] sm:$0xff]
    %v625 = vld [vmem:[#allocation8 + $0x160] sm:$0xff]
    %v626 = vld [vmem:[#allocation8 + $0x168] sm:$0xff]
    %v627 = vld [vmem:[#allocation8 + $0x170] sm:$0xff]
    %v628 = vld [vmem:[#allocation8 + $0x178] sm:$0xff]
    %v629 = vld [vmem:[#allocation8 + $0x180] sm:$0xff]
    %v630 = vld [vmem:[#allocation8 + $0x188] sm:$0xff]
    %v631 = vld [vmem:[#allocation8 + $0x190] sm:$0xff]
    %v632 = vld [vmem:[#allocation8 + $0x198] sm:$0xff]
    %v633 = vld [vmem:[#allocation8 + $0x1a0] sm:$0xff]
    %v634 = vld [vmem:[#allocation8 + $0x1a8] sm:$0xff]
    %v635 = vld [vmem:[#allocation8 + $0x1b0] sm:$0xff]
    %v636 = vld [vmem:[#allocation8 + $0x1b8] sm:$0xff]
    %v637 = vld [vmem:[#allocation8 + $0x1c0] sm:$0xff]
    %v638 = vld [vmem:[#allocation8 + $0x1c8] sm:$0xff]
    %v639 = vld [vmem:[#allocation8 + $0x1d0] sm:$0xff]
    %v640 = vld [vmem:[#allocation8 + $0x1d8] sm:$0xff]
    %v641 = vld [vmem:[#allocation8 + $0x1e0] sm:$0xff]
    %v642 = vld [vmem:[#allocation8 + $0x1e8] sm:$0xff]
    %v643 = vld [vmem:[#allocation8 + $0x1f0] sm:$0xff]
    %v644 = vld [vmem:[#allocation8 + $0x1f8] sm:$0xff]
    %v645 = vld [vmem:[#allocation8 + $0x200] sm:$0xff]
    %v646 = vld [vmem:[#allocation8 + $0x208] sm:$0xff]
    %v647 = vld [vmem:[#allocation8 + $0x210] sm:$0xff]
    %v648 = vld [vmem:[#allocation8 + $0x218] sm:$0xff]
    %v649 = vld [vmem:[#allocation8 + $0x220] sm:$0xff]
    %v650 = vld [vmem:[#allocation8 + $0x228] sm:$0xff]
    %v651 = vld [vmem:[#allocation8 + $0x230] sm:$0xff]
    %v652 = vld [vmem:[#allocation8 + $0x238] sm:$0xff]
    %v653 = vld [vmem:[#allocation8 + $0x240] sm:$0xff]
    %v654 = vld [vmem:[#allocation8 + $0x248] sm:$0xff]
    %v655 = vld [vmem:[#allocation8 + $0x250] sm:$0xff]
    %v656 = vld [vmem:[#allocation8 + $0x258] sm:$0xff]
    %v657 = vld [vmem:[#allocation8 + $0x260] sm:$0xff]
    %v658 = vld [vmem:[#allocation8 + $0x268] sm:$0xff]
    %v659 = vld [vmem:[#allocation8 + $0x270] sm:$0xff]
    %v660 = vld [vmem:[#allocation8 + $0x278] sm:$0xff]
    %v661 = vld [vmem:[#allocation8 + $0x280] sm:$0xff]
    %v662 = vld [vmem:[#allocation8 + $0x288] sm:$0xff]
    %v663 = vld [vmem:[#allocation8 + $0x290] sm:$0xff]
    %v664 = vld [vmem:[#allocation8 + $0x298] sm:$0xff]
    %v665 = vld [vmem:[#allocation8 + $0x2a0] sm:$0xff]
    %v666 = vld [vmem:[#allocation8 + $0x2a8] sm:$0xff]
    %v667 = vld [vmem:[#allocation8 + $0x2b0] sm:$0xff]
    %v668 = vld [vmem:[#allocation8 + $0x2b8] sm:$0xff]
    %v669 = vld [vmem:[#allocation8 + $0x2c0] sm:$0xff]
    %v670 = vld [vmem:[#allocation8 + $0x2c8] sm:$0xff]
    %v671 = vld [vmem:[#allocation8 + $0x2d0] sm:$0xff]
    %v672 = vld [vmem:[#allocation8 + $0x2d8] sm:$0xff]
    %v673 = vld [vmem:[#allocation8 + $0x2e0] sm:$0xff]
    %v674 = vld [vmem:[#allocation8 + $0x2e8] sm:$0xff]
    %v675 = vld [vmem:[#allocation8 + $0x2f0] sm:$0xff]
    %v676 = vld [vmem:[#allocation8 + $0x2f8] sm:$0xff]
    %v677 = vld [vmem:[#allocation8 + $0x300] sm:$0xff]
    %v678 = vld [vmem:[#allocation8 + $0x308] sm:$0xff]
    %v679 = vld [vmem:[#allocation8 + $0x310] sm:$0xff]
    %v680 = vld [vmem:[#allocation8 + $0x318] sm:$0xff]
    %v681 = vld [vmem:[#allocation8 + $0x320] sm:$0xff]
    %v682 = vld [vmem:[#allocation8 + $0x328] sm:$0xff]
    %v683 = vld [vmem:[#allocation8 + $0x330] sm:$0xff]
    %v684 = vld [vmem:[#allocation8 + $0x338] sm:$0xff]
    %v685 = vld [vmem:[#allocation8 + $0x340] sm:$0xff]
    %v686 = vld [vmem:[#allocation8 + $0x348] sm:$0xff]
    %v687 = vld [vmem:[#allocation8 + $0x350] sm:$0xff]
    %v688 = vld [vmem:[#allocation8 + $0x358] sm:$0xff]
    %v689 = vld [vmem:[#allocation8 + $0x360] sm:$0xff]
    %v690 = vld [vmem:[#allocation8 + $0x368] sm:$0xff]
    %v691 = vld [vmem:[#allocation8 + $0x370] sm:$0xff]
    %v692 = vld [vmem:[#allocation8 + $0x378] sm:$0xff]
    %v693 = vld [vmem:[#allocation8 + $0x380] sm:$0xff]
    %v694 = vld [vmem:[#allocation8 + $0x388] sm:$0xff]
    %v695 = vld [vmem:[#allocation8 + $0x390] sm:$0xff]
    %v696 = vld [vmem:[#allocation8 + $0x398] sm:$0xff]
    %v697 = vld [vmem:[#allocation8 + $0x3a0] sm:$0xff]
    %v698 = vld [vmem:[#allocation8 + $0x3a8] sm:$0xff]
    %v699 = vld [vmem:[#allocation8 + $0x3b0] sm:$0xff]
    %v700 = vld [vmem:[#allocation8 + $0x3b8] sm:$0xff]
    %v701 = vld [vmem:[#allocation8 + $0x3c0] sm:$0xff]
    %v702 = vld [vmem:[#allocation8 + $0x3c8] sm:$0xff]
    %v703 = vld [vmem:[#allocation8 + $0x3d0] sm:$0xff]
    %v704 = vld [vmem:[#allocation8 + $0x3d8] sm:$0xff]
    %v705 = vld [vmem:[#allocation8 + $0x3e0] sm:$0xff]
    %v706 = vld [vmem:[#allocation8 + $0x3e8] sm:$0xff]
    %v707 = vld [vmem:[#allocation8 + $0x3f0] sm:$0xff]
    %v708 = vld [vmem:[#allocation8 + $0x3f8] sm:$0xff]
    %v709 = vld [vmem:[#allocation8 + $0x400] sm:$0xff]
    %v710 = vld [vmem:[#allocation8 + $0x408] sm:$0xff]
    %v711 = vld [vmem:[#allocation8 + $0x410] sm:$0xff]
    %v712 = vld [vmem:[#allocation8 + $0x418] sm:$0xff]
    %v713 = vld [vmem:[#allocation8 + $0x420] sm:$0xff]
    %v714 = vld [vmem:[#allocation8 + $0x428] sm:$0xff]
    %v715 = vld [vmem:[#allocation8 + $0x430] sm:$0xff]
    %v716 = vld [vmem:[#allocation8 + $0x438] sm:$0xff]
    %v717 = vld [vmem:[#allocation8 + $0x440] sm:$0xff]
    %v718 = vld [vmem:[#allocation8 + $0x448] sm:$0xff]
    %v719 = vld [vmem:[#allocation8 + $0x450] sm:$0xff]
    %v720 = vld [vmem:[#allocation8 + $0x458] sm:$0xff]
    %v721 = vld [vmem:[#allocation8 + $0x460] sm:$0xff]
    %v722 = vld [vmem:[#allocation8 + $0x468] sm:$0xff]
    %v723 = vld [vmem:[#allocation8 + $0x470] sm:$0xff]
    %v724 = vld [vmem:[#allocation8 + $0x478] sm:$0xff]
    %v725 = vld [vmem:[#allocation8 + $0x480] sm:$0xff]
    %v726 = vld [vmem:[#allocation8 + $0x488] sm:$0xff]
    %v727 = vld [vmem:[#allocation8 + $0x490] sm:$0xff]
    %v728 = vld [vmem:[#allocation8 + $0x498] sm:$0xff]
    %v729 = vld [vmem:[#allocation8 + $0x4a0] sm:$0xff]
    %v730 = vld [vmem:[#allocation8 + $0x4a8] sm:$0xff]
    %v731 = vld [vmem:[#allocation8 + $0x4b0] sm:$0xff]
    %v732 = vld [vmem:[#allocation8 + $0x4b8] sm:$0xff]
    %v733 = vld [vmem:[#allocation8 + $0x4c0] sm:$0xff]
    %v734 = vld [vmem:[#allocation8 + $0x4c8] sm:$0xff]
    %v735 = vld [vmem:[#allocation8 + $0x4d0] sm:$0xff]
    %v736 = vld [vmem:[#allocation8 + $0x4d8] sm:$0xff]
    %v737 = vld [vmem:[#allocation8 + $0x4e0] sm:$0xff]
    %v738 = vld [vmem:[#allocation8 + $0x4e8] sm:$0xff]
    %v739 = vld [vmem:[#allocation8 + $0x4f0] sm:$0xff]
    %v740 = vld [vmem:[#allocation8 + $0x4f8] sm:$0xff]
    %v741 = vld [vmem:[#allocation8 + $0x500] sm:$0xff]
    %v742 = vld [vmem:[#allocation8 + $0x508] sm:$0xff]
    %v743 = vld [vmem:[#allocation8 + $0x510] sm:$0xff]
    %v744 = vld [vmem:[#allocation8 + $0x518] sm:$0xff]
    %v745 = vld [vmem:[#allocation8 + $0x520] sm:$0xff]
    %v746 = vld [vmem:[#allocation8 + $0x528] sm:$0xff]
    %v747 = vld [vmem:[#allocation8 + $0x530] sm:$0xff]
    %v748 = vld [vmem:[#allocation8 + $0x538] sm:$0xff]
    %v749 = vld [vmem:[#allocation8 + $0x540] sm:$0xff]
    %v750 = vld [vmem:[#allocation8 + $0x548] sm:$0xff]
    %v751 = vld [vmem:[#allocation8 + $0x550] sm:$0xff]
    %v752 = vld [vmem:[#allocation8 + $0x558] sm:$0xff]
    %v753 = vld [vmem:[#allocation8 + $0x560] sm:$0xff]
    %v754 = vld [vmem:[#allocation8 + $0x568] sm:$0xff]
    %v755 = vld [vmem:[#allocation8 + $0x570] sm:$0xff]
    %v756 = vld [vmem:[#allocation8 + $0x578] sm:$0xff]
    %v757 = vld [vmem:[#allocation8 + $0x580] sm:$0xff]
    %v758 = vld [vmem:[#allocation8 + $0x588] sm:$0xff]
    %v759 = vld [vmem:[#allocation8 + $0x590] sm:$0xff]
    %v760 = vld [vmem:[#allocation8 + $0x598] sm:$0xff]
    %v761 = vld [vmem:[#allocation8 + $0x5a0] sm:$0xff]
    %v762 = vld [vmem:[#allocation8 + $0x5a8] sm:$0xff]
    %v763 = vld [vmem:[#allocation8 + $0x5b0] sm:$0xff]
    %v764 = vld [vmem:[#allocation8 + $0x5b8] sm:$0xff]
    %v765 = vld [vmem:[#allocation8 + $0x5c0] sm:$0xff]
    %v766 = vld [vmem:[#allocation8 + $0x5c8] sm:$0xff]
    %v767 = vld [vmem:[#allocation8 + $0x5d0] sm:$0xff]
    %v768 = vld [vmem:[#allocation8 + $0x5d8] sm:$0xff]
    %v769 = vld [vmem:[#allocation8 + $0x5e0] sm:$0xff]
    %v770 = vld [vmem:[#allocation8 + $0x5e8] sm:$0xff]
    %v771 = vld [vmem:[#allocation8 + $0x5f0] sm:$0xff]
    %v772 = vld [vmem:[#allocation8 + $0x5f8] sm:$0xff]
    %v773 = vld [vmem:[#allocation8 + $0x600] sm:$0xff]
    %v774 = vld [vmem:[#allocation8 + $0x608] sm:$0xff]
    %v775 = vld [vmem:[#allocation8 + $0x610] sm:$0xff]
    %v776 = vld [vmem:[#allocation8 + $0x618] sm:$0xff]
    %v777 = vld [vmem:[#allocation8 + $0x620] sm:$0xff]
    %v778 = vld [vmem:[#allocation8 + $0x628] sm:$0xff]
    %v779 = vld [vmem:[#allocation8 + $0x630] sm:$0xff]
    %v780 = vld [vmem:[#allocation8 + $0x638] sm:$0xff]
    %v781 = vld [vmem:[#allocation8 + $0x640] sm:$0xff]
    %v782 = vld [vmem:[#allocation8 + $0x648] sm:$0xff]
    %v783 = vld [vmem:[#allocation8 + $0x650] sm:$0xff]
    %v784 = vld [vmem:[#allocation8 + $0x658] sm:$0xff]
    %v785 = vld [vmem:[#allocation8 + $0x660] sm:$0xff]
    %v786 = vld [vmem:[#allocation8 + $0x668] sm:$0xff]
    %v787 = vld [vmem:[#allocation8 + $0x670] sm:$0xff]
    %v788 = vld [vmem:[#allocation8 + $0x678] sm:$0xff]
    %v789 = vld [vmem:[#allocation8 + $0x680] sm:$0xff]
    %v790 = vld [vmem:[#allocation8 + $0x688] sm:$0xff]
    %v791 = vld [vmem:[#allocation8 + $0x690] sm:$0xff]
    %v792 = vld [vmem:[#allocation8 + $0x698] sm:$0xff]
    %v793 = vld [vmem:[#allocation8 + $0x6a0] sm:$0xff]
    %v794 = vld [vmem:[#allocation8 + $0x6a8] sm:$0xff]
    %v795 = vld [vmem:[#allocation8 + $0x6b0] sm:$0xff]
    %v796 = vld [vmem:[#allocation8 + $0x6b8] sm:$0xff]
    %v797 = vld [vmem:[#allocation8 + $0x6c0] sm:$0xff]
    %v798 = vld [vmem:[#allocation8 + $0x6c8] sm:$0xff]
    %v799 = vld [vmem:[#allocation8 + $0x6d0] sm:$0xff]
    %v800 = vld [vmem:[#allocation8 + $0x6d8] sm:$0xff]
    %v801 = vld [vmem:[#allocation8 + $0x6e0] sm:$0xff]
    %v802 = vld [vmem:[#allocation8 + $0x6e8] sm:$0xff]
    %v803 = vld [vmem:[#allocation8 + $0x6f0] sm:$0xff]
    %v804 = vld [vmem:[#allocation8 + $0x6f8] sm:$0xff]
    %v805 = vld [vmem:[#allocation8 + $0x700] sm:$0xff]
    %v806 = vld [vmem:[#allocation8 + $0x708] sm:$0xff]
    %v807 = vld [vmem:[#allocation8 + $0x710] sm:$0xff]
    %v808 = vld [vmem:[#allocation8 + $0x718] sm:$0xff]
    %v809 = vld [vmem:[#allocation8 + $0x720] sm:$0xff]
    %v810 = vld [vmem:[#allocation8 + $0x728] sm:$0xff]
    %v811 = vld [vmem:[#allocation8 + $0x730] sm:$0xff]
    %v812 = vld [vmem:[#allocation8 + $0x738] sm:$0xff]
    %v813 = vld [vmem:[#allocation8 + $0x740] sm:$0xff]
    %v814 = vld [vmem:[#allocation8 + $0x748] sm:$0xff]
    %v815 = vld [vmem:[#allocation8 + $0x750] sm:$0xff]
    %v816 = vld [vmem:[#allocation8 + $0x758] sm:$0xff]
    %v817 = vld [vmem:[#allocation8 + $0x760] sm:$0xff]
    %v818 = vld [vmem:[#allocation8 + $0x768] sm:$0xff]
    %v819 = vld [vmem:[#allocation8 + $0x770] sm:$0xff]
    %v820 = vld [vmem:[#allocation8 + $0x778] sm:$0xff]
    %v821 = vld [vmem:[#allocation8 + $0x780] sm:$0xff]
    %v822 = vld [vmem:[#allocation8 + $0x788] sm:$0xff]
    %v823 = vld [vmem:[#allocation8 + $0x790] sm:$0xff]
    %v824 = vld [vmem:[#allocation8 + $0x798] sm:$0xff]
    %v825 = vld [vmem:[#allocation8 + $0x7a0] sm:$0xff]
    %v826 = vld [vmem:[#allocation8 + $0x7a8] sm:$0xff]
    %v827 = vld [vmem:[#allocation8 + $0x7b0] sm:$0xff]
    %v828 = vld [vmem:[#allocation8 + $0x7b8] sm:$0xff]
    %v829 = vld [vmem:[#allocation8 + $0x7c0] sm:$0xff]
    %v830 = vld [vmem:[#allocation8 + $0x7c8] sm:$0xff]
    %v831 = vld [vmem:[#allocation8 + $0x7d0] sm:$0xff]
    %v832 = vld [vmem:[#allocation8 + $0x7d8] sm:$0xff]
    %v833 = vld [vmem:[#allocation8 + $0x7e0] sm:$0xff]
    %v834 = vld [vmem:[#allocation8 + $0x7e8] sm:$0xff]
    %v835 = vld [vmem:[#allocation8 + $0x7f0] sm:$0xff]
    %v836 = vld [vmem:[#allocation8 + $0x7f8] sm:$0xff]
    %v837 = vld [vmem:[#allocation8 + $0x800] sm:$0xff]
    %v838 = vld [vmem:[#allocation8 + $0x808] sm:$0xff]
    %v839 = vld [vmem:[#allocation8 + $0x810] sm:$0xff]
    %v840 = vld [vmem:[#allocation8 + $0x818] sm:$0xff]
    %v841 = vld [vmem:[#allocation8 + $0x820] sm:$0xff]
    %v842 = vld [vmem:[#allocation8 + $0x828] sm:$0xff]
    %v843 = vld [vmem:[#allocation8 + $0x830] sm:$0xff]
    %v844 = vld [vmem:[#allocation8 + $0x838] sm:$0xff]
    %v845 = vld [vmem:[#allocation8 + $0x840] sm:$0xff]
    %v846 = vld [vmem:[#allocation8 + $0x848] sm:$0xff]
    %v847 = vld [vmem:[#allocation8 + $0x850] sm:$0xff]
    %v848 = vld [vmem:[#allocation8 + $0x858] sm:$0xff]
    %v849 = vld [vmem:[#allocation8 + $0x860] sm:$0xff]
    %v850 = vld [vmem:[#allocation8 + $0x868] sm:$0xff]
    %v851 = vld [vmem:[#allocation8 + $0x870] sm:$0xff]
    %v852 = vld [vmem:[#allocation8 + $0x878] sm:$0xff]
    %v853 = vld [vmem:[#allocation8 + $0x880] sm:$0xff]
    %v854 = vld [vmem:[#allocation8 + $0x888] sm:$0xff]
    %v855 = vld [vmem:[#allocation8 + $0x890] sm:$0xff]
    %v856 = vld [vmem:[#allocation8 + $0x898] sm:$0xff]
    %v857 = vld [vmem:[#allocation8 + $0x8a0] sm:$0xff]
    %v858 = vld [vmem:[#allocation8 + $0x8a8] sm:$0xff]
    %v859 = vld [vmem:[#allocation8 + $0x8b0] sm:$0xff]
    %v860 = vld [vmem:[#allocation8 + $0x8b8] sm:$0xff]
    %v861 = vld [vmem:[#allocation8 + $0x8c0] sm:$0xff]
    %v862 = vld [vmem:[#allocation8 + $0x8c8] sm:$0xff]
    %v863 = vld [vmem:[#allocation8 + $0x8d0] sm:$0xff]
    %v864 = vld [vmem:[#allocation8 + $0x8d8] sm:$0xff]
    %v865 = vld [vmem:[#allocation8 + $0x8e0] sm:$0xff]
    %v866 = vld [vmem:[#allocation8 + $0x8e8] sm:$0xff]
    %v867 = vld [vmem:[#allocation8 + $0x8f0] sm:$0xff]
    %v868 = vld [vmem:[#allocation8 + $0x8f8] sm:$0xff]
    %v869 = vld [vmem:[#allocation8 + $0x900] sm:$0xff]
    %v870 = vld [vmem:[#allocation8 + $0x908] sm:$0xff]
    %v871 = vld [vmem:[#allocation8 + $0x910] sm:$0xff]
    %v872 = vld [vmem:[#allocation8 + $0x918] sm:$0xff]
    %v873 = vld [vmem:[#allocation8 + $0x920] sm:$0xff]
    %v874 = vld [vmem:[#allocation8 + $0x928] sm:$0xff]
    %v875 = vld [vmem:[#allocation8 + $0x930] sm:$0xff]
    %v876 = vld [vmem:[#allocation8 + $0x938] sm:$0xff]
    %v877 = vld [vmem:[#allocation8 + $0x940] sm:$0xff]
    %v878 = vld [vmem:[#allocation8 + $0x948] sm:$0xff]
    %v879 = vld [vmem:[#allocation8 + $0x950] sm:$0xff]
    %v880 = vld [vmem:[#allocation8 + $0x958] sm:$0xff]
    %v881 = vld [vmem:[#allocation8 + $0x960] sm:$0xff]
    %v882 = vld [vmem:[#allocation8 + $0x968] sm:$0xff]
    %v883 = vld [vmem:[#allocation8 + $0x970] sm:$0xff]
    %v884 = vld [vmem:[#allocation8 + $0x978] sm:$0xff]
    %v885 = vld [vmem:[#allocation8 + $0x980] sm:$0xff]
    %v886 = vld [vmem:[#allocation8 + $0x988] sm:$0xff]
    %v887 = vld [vmem:[#allocation8 + $0x990] sm:$0xff]
    %v888 = vld [vmem:[#allocation8 + $0x998] sm:$0xff]
    %v889 = vld [vmem:[#allocation8 + $0x9a0] sm:$0xff]
    %v890 = vld [vmem:[#allocation8 + $0x9a8] sm:$0xff]
    %v891 = vld [vmem:[#allocation8 + $0x9b0] sm:$0xff]
    %v892 = vld [vmem:[#allocation8 + $0x9b8] sm:$0xff]
    %v893 = vld [vmem:[#allocation8 + $0x9c0] sm:$0xff]
    %v894 = vld [vmem:[#allocation8 + $0x9c8] sm:$0xff]
    %v895 = vld [vmem:[#allocation8 + $0x9d0] sm:$0xff]
    %v896 = vld [vmem:[#allocation8 + $0x9d8] sm:$0xff]
    %v897 = vld [vmem:[#allocation8 + $0x9e0] sm:$0xff]
    %v898 = vld [vmem:[#allocation8 + $0x9e8] sm:$0xff]
    %v899 = vld [vmem:[#allocation8 + $0x9f0] sm:$0xff]
    %v900 = vld [vmem:[#allocation8 + $0x9f8] sm:$0xff]
    %v901 = vld [vmem:[#allocation8 + $0xa00] sm:$0xff]
    %v902 = vld [vmem:[#allocation8 + $0xa08] sm:$0xff]
    %v903 = vld [vmem:[#allocation8 + $0xa10] sm:$0xff]
    %v904 = vld [vmem:[#allocation8 + $0xa18] sm:$0xff]
    %v905 = vld [vmem:[#allocation8 + $0xa20] sm:$0xff]
    %v906 = vld [vmem:[#allocation8 + $0xa28] sm:$0xff]
    %v907 = vld [vmem:[#allocation8 + $0xa30] sm:$0xff]
    %v908 = vld [vmem:[#allocation8 + $0xa38] sm:$0xff]
    %v909 = vld [vmem:[#allocation8 + $0xa40] sm:$0xff]
    %v910 = vld [vmem:[#allocation8 + $0xa48] sm:$0xff]
    %v911 = vld [vmem:[#allocation8 + $0xa50] sm:$0xff]
    %v912 = vld [vmem:[#allocation8 + $0xa58] sm:$0xff]
    %v913 = vld [vmem:[#allocation8 + $0xa60] sm:$0xff]
    %v914 = vld [vmem:[#allocation8 + $0xa68] sm:$0xff]
    %v915 = vld [vmem:[#allocation8 + $0xa70] sm:$0xff]
    %v916 = vld [vmem:[#allocation8 + $0xa78] sm:$0xff]
    %v917 = vld [vmem:[#allocation8 + $0xa80] sm:$0xff]
    %v918 = vld [vmem:[#allocation8 + $0xa88] sm:$0xff]
    %v919 = vld [vmem:[#allocation8 + $0xa90] sm:$0xff]
    %v920 = vld [vmem:[#allocation8 + $0xa98] sm:$0xff]
    %v921 = vld [vmem:[#allocation8 + $0xaa0] sm:$0xff]
    %v922 = vld [vmem:[#allocation8 + $0xaa8] sm:$0xff]
    %v923 = vld [vmem:[#allocation8 + $0xab0] sm:$0xff]
    %v924 = vld [vmem:[#allocation8 + $0xab8] sm:$0xff]
    %v925 = vld [vmem:[#allocation8 + $0xac0] sm:$0xff]
    %v926 = vld [vmem:[#allocation8 + $0xac8] sm:$0xff]
    %v927 = vld [vmem:[#allocation8 + $0xad0] sm:$0xff]
    %v928 = vld [vmem:[#allocation8 + $0xad8] sm:$0xff]
    %v929 = vld [vmem:[#allocation8 + $0xae0] sm:$0xff]
    %v930 = vld [vmem:[#allocation8 + $0xae8] sm:$0xff]
    %v931 = vld [vmem:[#allocation8 + $0xaf0] sm:$0xff]
    %v932 = vld [vmem:[#allocation8 + $0xaf8] sm:$0xff]
    %v933 = vld [vmem:[#allocation8 + $0xb00] sm:$0xff]
    %v934 = vld [vmem:[#allocation8 + $0xb08] sm:$0xff]
    %v935 = vld [vmem:[#allocation8 + $0xb10] sm:$0xff]
    %v936 = vld [vmem:[#allocation8 + $0xb18] sm:$0xff]
    %v937 = vld [vmem:[#allocation8 + $0xb20] sm:$0xff]
    %v938 = vld [vmem:[#allocation8 + $0xb28] sm:$0xff]
    %v939 = vld [vmem:[#allocation8 + $0xb30] sm:$0xff]
    %v940 = vld [vmem:[#allocation8 + $0xb38] sm:$0xff]
    %v941 = vld [vmem:[#allocation8 + $0xb40] sm:$0xff]
    %v942 = vld [vmem:[#allocation8 + $0xb48] sm:$0xff]
    %v943 = vld [vmem:[#allocation8 + $0xb50] sm:$0xff]
    %v944 = vld [vmem:[#allocation8 + $0xb58] sm:$0xff]
    %v945 = vld [vmem:[#allocation8 + $0xb60] sm:$0xff]
    %v946 = vld [vmem:[#allocation8 + $0xb68] sm:$0xff]
    %v947 = vld [vmem:[#allocation8 + $0xb70] sm:$0xff]
    %v948 = vld [vmem:[#allocation8 + $0xb78] sm:$0xff]
    %v949 = vld [vmem:[#allocation8 + $0xb80] sm:$0xff]
    %v950 = vld [vmem:[#allocation8 + $0xb88] sm:$0xff]
    %v951 = vld [vmem:[#allocation8 + $0xb90] sm:$0xff]
    %v952 = vld [vmem:[#allocation8 + $0xb98] sm:$0xff]
    %v953 = vld [vmem:[#allocation8 + $0xba0] sm:$0xff]
    %v954 = vld [vmem:[#allocation8 + $0xba8] sm:$0xff]
    %v955 = vld [vmem:[#allocation8 + $0xbb0] sm:$0xff]
    %v956 = vld [vmem:[#allocation8 + $0xbb8] sm:$0xff]
    %v957 = vld [vmem:[#allocation8 + $0xbc0] sm:$0xff]
    %v958 = vld [vmem:[#allocation8 + $0xbc8] sm:$0xff]
    %v959 = vld [vmem:[#allocation8 + $0xbd0] sm:$0xff]
    %v960 = vld [vmem:[#allocation8 + $0xbd8] sm:$0xff]
    %v961 = vld [vmem:[#allocation8 + $0xbe0] sm:$0xff]
    %v962 = vld [vmem:[#allocation8 + $0xbe8] sm:$0xff]
    %v963 = vld [vmem:[#allocation8 + $0xbf0] sm:$0xff]
    %v964 = vld [vmem:[#allocation8 + $0xbf8] sm:$0xff]
    %v965 = vld [vmem:[#allocation8 + $0xc00] sm:$0xff]
    %v966 = vld [vmem:[#allocation8 + $0xc08] sm:$0xff]
    %v967 = vld [vmem:[#allocation8 + $0xc10] sm:$0xff]
    %v968 = vld [vmem:[#allocation8 + $0xc18] sm:$0xff]
    %v969 = vld [vmem:[#allocation8 + $0xc20] sm:$0xff]
    %v970 = vld [vmem:[#allocation8 + $0xc28] sm:$0xff]
    %v971 = vld [vmem:[#allocation8 + $0xc30] sm:$0xff]
    %v972 = vld [vmem:[#allocation8 + $0xc38] sm:$0xff]
    %v973 = vld [vmem:[#allocation8 + $0xc40] sm:$0xff]
    %v974 = vld [vmem:[#allocation8 + $0xc48] sm:$0xff]
    %v975 = vld [vmem:[#allocation8 + $0xc50] sm:$0xff]
    %v976 = vld [vmem:[#allocation8 + $0xc58] sm:$0xff]
    %v977 = vld [vmem:[#allocation8 + $0xc60] sm:$0xff]
    %v978 = vld [vmem:[#allocation8 + $0xc68] sm:$0xff]
    %v979 = vld [vmem:[#allocation8 + $0xc70] sm:$0xff]
    %v980 = vld [vmem:[#allocation8 + $0xc78] sm:$0xff]
    %v981 = vld [vmem:[#allocation8 + $0xc80] sm:$0xff]
    %v982 = vld [vmem:[#allocation8 + $0xc88] sm:$0xff]
    %v983 = vld [vmem:[#allocation8 + $0xc90] sm:$0xff]
    %v984 = vld [vmem:[#allocation8 + $0xc98] sm:$0xff]
    %v985 = vld [vmem:[#allocation8 + $0xca0] sm:$0xff]
    %v986 = vld [vmem:[#allocation8 + $0xca8] sm:$0xff]
    %v987 = vld [vmem:[#allocation8 + $0xcb0] sm:$0xff]
    %v988 = vld [vmem:[#allocation8 + $0xcb8] sm:$0xff]
    %v989 = vld [vmem:[#allocation8 + $0xcc0] sm:$0xff]
    %v990 = vld [vmem:[#allocation8 + $0xcc8] sm:$0xff]
    %v991 = vld [vmem:[#allocation8 + $0xcd0] sm:$0xff]
    %v992 = vld [vmem:[#allocation8 + $0xcd8] sm:$0xff]
    %v993 = vld [vmem:[#allocation8 + $0xce0] sm:$0xff]
    %v994 = vld [vmem:[#allocation8 + $0xce8] sm:$0xff]
    %v995 = vld [vmem:[#allocation8 + $0xcf0] sm:$0xff]
    %v996 = vld [vmem:[#allocation8 + $0xcf8] sm:$0xff]
    %v997 = vld [vmem:[#allocation8 + $0xd00] sm:$0xff]
    %v998 = vld [vmem:[#allocation8 + $0xd08] sm:$0xff]
    %v999 = vld [vmem:[#allocation8 + $0xd10] sm:$0xff]
    %v1000 = vld [vmem:[#allocation8 + $0xd18] sm:$0xff]
    %v1001 = vld [vmem:[#allocation8 + $0xd20] sm:$0xff]
    %v1002 = vld [vmem:[#allocation8 + $0xd28] sm:$0xff]
    %v1003 = vld [vmem:[#allocation8 + $0xd30] sm:$0xff]
    %v1004 = vld [vmem:[#allocation8 + $0xd38] sm:$0xff]
    %v1005 = vld [vmem:[#allocation8 + $0xd40] sm:$0xff]
    %v1006 = vld [vmem:[#allocation8 + $0xd48] sm:$0xff]
    %v1007 = vld [vmem:[#allocation8 + $0xd50] sm:$0xff]
    %v1008 = vld [vmem:[#allocation8 + $0xd58] sm:$0xff]
    %v1009 = vld [vmem:[#allocation8 + $0xd60] sm:$0xff]
    %v1010 = vld [vmem:[#allocation8 + $0xd68] sm:$0xff]
    %v1011 = vld [vmem:[#allocation8 + $0xd70] sm:$0xff]
    %v1012 = vld [vmem:[#allocation8 + $0xd78] sm:$0xff]
    %v1013 = vld [vmem:[#allocation8 + $0xd80] sm:$0xff]
    %v1014 = vld [vmem:[#allocation8 + $0xd88] sm:$0xff]
    %v1015 = vld [vmem:[#allocation8 + $0xd90] sm:$0xff]
    %v1016 = vld [vmem:[#allocation8 + $0xd98] sm:$0xff]
    %v1017 = vld [vmem:[#allocation8 + $0xda0] sm:$0xff]
    %v1018 = vld [vmem:[#allocation8 + $0xda8] sm:$0xff]
    %v1019 = vld [vmem:[#allocation8 + $0xdb0] sm:$0xff]
    %v1020 = vld [vmem:[#allocation8 + $0xdb8] sm:$0xff]
    %v1021 = vld [vmem:[#allocation8 + $0xdc0] sm:$0xff]
    %v1022 = vld [vmem:[#allocation8 + $0xdc8] sm:$0xff]
    %v1023 = vld [vmem:[#allocation8 + $0xdd0] sm:$0xff]
    %v1024 = vld [vmem:[#allocation8 + $0xdd8] sm:$0xff]
    %v1025 = vld [vmem:[#allocation8 + $0xde0] sm:$0xff]
    %v1026 = vld [vmem:[#allocation8 + $0xde8] sm:$0xff]
    %v1027 = vld [vmem:[#allocation8 + $0xdf0] sm:$0xff]
    %v1028 = vld [vmem:[#allocation8 + $0xdf8] sm:$0xff]
    %v1029 = vld [vmem:[#allocation8 + $0xe00] sm:$0xff]
    %v1030 = vld [vmem:[#allocation8 + $0xe08] sm:$0xff]
    %v1031 = vld [vmem:[#allocation8 + $0xe10] sm:$0xff]
    %v1032 = vld [vmem:[#allocation8 + $0xe18] sm:$0xff]
    %v1033 = vld [vmem:[#allocation8 + $0xe20] sm:$0xff]
    %v1034 = vld [vmem:[#allocation8 + $0xe28] sm:$0xff]
    %v1035 = vld [vmem:[#allocation8 + $0xe30] sm:$0xff]
    %v1036 = vld [vmem:[#allocation8 + $0xe38] sm:$0xff]
    %v1037 = vld [vmem:[#allocation8 + $0xe40] sm:$0xff]
    %v1038 = vld [vmem:[#allocation8 + $0xe48] sm:$0xff]
    %v1039 = vld [vmem:[#allocation8 + $0xe50] sm:$0xff]
    %v1040 = vld [vmem:[#allocation8 + $0xe58] sm:$0xff]
    %v1041 = vld [vmem:[#allocation8 + $0xe60] sm:$0xff]
    %v1042 = vld [vmem:[#allocation8 + $0xe68] sm:$0xff]
    %v1043 = vld [vmem:[#allocation8 + $0xe70] sm:$0xff]
    %v1044 = vld [vmem:[#allocation8 + $0xe78] sm:$0xff]
    %v1045 = vld [vmem:[#allocation8 + $0xe80] sm:$0xff]
    %v1046 = vld [vmem:[#allocation8 + $0xe88] sm:$0xff]
    %v1047 = vld [vmem:[#allocation8 + $0xe90] sm:$0xff]
    %v1048 = vld [vmem:[#allocation8 + $0xe98] sm:$0xff]
    %v1049 = vld [vmem:[#allocation8 + $0xea0] sm:$0xff]
    %v1050 = vld [vmem:[#allocation8 + $0xea8] sm:$0xff]
    %v1051 = vld [vmem:[#allocation8 + $0xeb0] sm:$0xff]
    %v1052 = vld [vmem:[#allocation8 + $0xeb8] sm:$0xff]
    %v1053 = vld [vmem:[#allocation8 + $0xec0] sm:$0xff]
    %v1054 = vld [vmem:[#allocation8 + $0xec8] sm:$0xff]
    %v1055 = vld [vmem:[#allocation8 + $0xed0] sm:$0xff]
    %v1056 = vld [vmem:[#allocation8 + $0xed8] sm:$0xff]
    %v1057 = vld [vmem:[#allocation8 + $0xee0] sm:$0xff]
    %v1058 = vld [vmem:[#allocation8 + $0xee8] sm:$0xff]
    %v1059 = vld [vmem:[#allocation8 + $0xef0] sm:$0xff]
    %v1060 = vld [vmem:[#allocation8 + $0xef8] sm:$0xff]
    %v1061 = vld [vmem:[#allocation8 + $0xf00] sm:$0xff]
    %v1062 = vld [vmem:[#allocation8 + $0xf08] sm:$0xff]
    %v1063 = vld [vmem:[#allocation8 + $0xf10] sm:$0xff]
    %v1064 = vld [vmem:[#allocation8 + $0xf18] sm:$0xff]
    %v1065 = vld [vmem:[#allocation8 + $0xf20] sm:$0xff]
    %v1066 = vld [vmem:[#allocation8 + $0xf28] sm:$0xff]
    %v1067 = vld [vmem:[#allocation8 + $0xf30] sm:$0xff]
    %v1068 = vld [vmem:[#allocation8 + $0xf38] sm:$0xff]
    %v1069 = vld [vmem:[#allocation8 + $0xf40] sm:$0xff]
    %v1070 = vld [vmem:[#allocation8 + $0xf48] sm:$0xff]
    %v1071 = vld [vmem:[#allocation8 + $0xf50] sm:$0xff]
    %v1072 = vld [vmem:[#allocation8 + $0xf58] sm:$0xff]
    %v1073 = vld [vmem:[#allocation8 + $0xf60] sm:$0xff]
    %v1074 = vld [vmem:[#allocation8 + $0xf68] sm:$0xff]
    %v1075 = vld [vmem:[#allocation8 + $0xf70] sm:$0xff]
    %v1076 = vld [vmem:[#allocation8 + $0xf78] sm:$0xff]
    %v1077 = vld [vmem:[#allocation8 + $0xf80] sm:$0xff]
    %v1078 = vld [vmem:[#allocation8 + $0xf88] sm:$0xff]
    %v1079 = vld [vmem:[#allocation8 + $0xf90] sm:$0xff]
    %v1080 = vld [vmem:[#allocation8 + $0xf98] sm:$0xff]
    %v1081 = vld [vmem:[#allocation8 + $0xfa0] sm:$0xff]
    %v1082 = vld [vmem:[#allocation8 + $0xfa8] sm:$0xff]
    %v1083 = vld [vmem:[#allocation8 + $0xfb0] sm:$0xff]
    %v1084 = vld [vmem:[#allocation8 + $0xfb8] sm:$0xff]
    %v1085 = vld [vmem:[#allocation8 + $0xfc0] sm:$0xff]
    %v1086 = vld [vmem:[#allocation8 + $0xfc8] sm:$0xff]
    %v1087 = vld [vmem:[#allocation8 + $0xfd0] sm:$0xff]
    %v1088 = vld [vmem:[#allocation8 + $0xfd8] sm:$0xff]
    %v1089 = vld [vmem:[#allocation8 + $0xfe0] sm:$0xff]
    %v1090 = vld [vmem:[#allocation8 + $0xfe8] sm:$0xff]
    %v1091 = vld [vmem:[#allocation8 + $0xff0] sm:$0xff]
    %v1092 = vld [vmem:[#allocation8 + $0xff8] sm:$0xff]
    %v1093 = vld [vmem:[#allocation10] sm:$0xf]
    %v1095 = vlaneseq
    %v1096 = vshrl.u32 %v1095, 7
    %v1097 = vsub.s32 0, %v1096
    %v1098 = vrot.slane %v1093, %v1097
    %v1099 = vlaneseq
    %v1100 = vshrl.u32 %v1099, 7
    %v1101 = vsub.s32 1, %v1100
    %v1102 = vrot.slane %v1093, %v1101
    %v1103 = vlaneseq
    %v1104 = vshrl.u32 %v1103, 7
    %v1105 = vsub.s32 2, %v1104
    %v1106 = vrot.slane %v1093, %v1105
    %v1107 = vlaneseq
    %v1108 = vshrl.u32 %v1107, 7
    %v1109 = vsub.s32 3, %v1108
    %v1110 = vrot.slane %v1093, %v1109
    %1115 = vmatprep.subr.mxu0 %v642
    %1116 = vmatpush1.msra.mxu0 %v641
    %1117 = vmatprep.subr.mxu0 %v638
    %1118 = vmatpush1.msra.mxu0 %v637
    %1119 = vmatprep.subr.mxu0 %v634
    %1120 = vmatpush1.msra.mxu0 %v633
    %1121 = vmatprep.subr.mxu0 %v630
    %1122 = vmatpush1.msra.mxu0 %v629
    %1123 = vmatprep.subr.mxu0 %v626
    %1124 = vmatpush1.msra.mxu0 %v625
    %1125 = vmatprep.subr.mxu0 %v622
    %1126 = vmatpush1.msra.mxu0 %v621
    %1127 = vmatprep.subr.mxu0 %v618
    %1128 = vmatpush1.msra.mxu0 %v617
    %1129 = vmatprep.subr.mxu0 %v614
    %1130 = vmatpush1.msra.mxu0 %v613
    %1131 = vmatprep.subr.mxu0 %v610
    %1132 = vmatpush1.msra.mxu0 %v609
    %1133 = vmatprep.subr.mxu0 %v606
    %1134 = vmatpush1.msra.mxu0 %v605
    %1135 = vmatprep.subr.mxu0 %v602
    %1136 = vmatpush1.msra.mxu0 %v601
    %1137 = vmatprep.subr.mxu0 %v598
    %1138 = vmatpush1.msra.mxu0 %v597
    %1139 = vmatprep.subr.mxu0 %v594
    %1140 = vmatpush1.msra.mxu0 %v593
    %1141 = vmatprep.subr.mxu0 %v590
    %1142 = vmatpush1.msra.mxu0 %v589
    %1143 = vmatprep.subr.mxu0 %v586
    %1144 = vmatpush1.msra.mxu0 %v585
    %1145 = vmatprep.subr.mxu0 %v582
    %1146 = vmatpush1.msra.mxu0 %v581
    %1147 = vmatprep.subr.mxu0 %v706
    %1148 = vmatpush2.msra.mxu0 %v705
    %1149 = vmatprep.subr.mxu0 %v702
    %1150 = vmatpush2.msra.mxu0 %v701
    %1151 = vmatprep.subr.mxu0 %v698
    %1152 = vmatpush2.msra.mxu0 %v697
    %1153 = vmatprep.subr.mxu0 %v694
    %1154 = vmatpush2.msra.mxu0 %v693
    %1155 = vmatprep.subr.mxu0 %v690
    %1156 = vmatpush2.msra.mxu0 %v689
    %1157 = vmatprep.subr.mxu0 %v686
    %1158 = vmatpush2.msra.mxu0 %v685
    %1159 = vmatprep.subr.mxu0 %v682
    %1160 = vmatpush2.msra.mxu0 %v681
    %1161 = vmatprep.subr.mxu0 %v678
    %1162 = vmatpush2.msra.mxu0 %v677
    %1163 = vmatprep.subr.mxu0 %v674
    %1164 = vmatpush2.msra.mxu0 %v673
    %1165 = vmatprep.subr.mxu0 %v670
    %1166 = vmatpush2.msra.mxu0 %v669
    %1167 = vmatprep.subr.mxu0 %v666
    %1168 = vmatpush2.msra.mxu0 %v665
    %1169 = vmatprep.subr.mxu0 %v662
    %1170 = vmatpush2.msra.mxu0 %v661
    %1171 = vmatprep.subr.mxu0 %v658
    %1172 = vmatpush2.msra.mxu0 %v657
    %1173 = vmatprep.subr.mxu0 %v654
    %1174 = vmatpush2.msra.mxu0 %v653
    %1175 = vmatprep.subr.mxu0 %v650
    %1176 = vmatpush2.msra.mxu0 %v649
    %1177 = vmatprep.subr.mxu0 %v646
    %1178 = vmatpush2.msra.mxu0 %v645
    %1179 = vmatprep.mubr.f32.mxu0 %v566
    %1180 = vmatmul.mubr.f32.gmra.mxu0 %v565
    %v1181 = vpop.f32.mrf.mxu0
    %v1182 = vadd.f32 %v1098, %v1181
    %v1183 = vpop.f32.mrf.mxu0
    %v1184 = vadd.f32 %v1102, %v1183
    %1185 = vmatprep.mubr.f32.mxu0 %v574
    %1186 = vmatmul.mubr.f32.gmra.mxu0 %v573
    %v1187 = vpop.f32.mrf.mxu0
    %v1188 = vadd.f32 %v1098, %v1187
    %v1189 = vpop.f32.mrf.mxu0
    %v1190 = vadd.f32 %v1102, %v1189
    %1191 = vdwg.mxu0
    %1192 = vmatprep.subr.mxu0 %v770
    %1193 = vmatpush1.msra.mxu0 %v769
    %1194 = vmatprep.subr.mxu0 %v766
    %1195 = vmatpush1.msra.mxu0 %v765
    %1196 = vmatprep.subr.mxu0 %v762
    %1197 = vmatpush1.msra.mxu0 %v761
    %1198 = vmatprep.subr.mxu0 %v758
    %1199 = vmatpush1.msra.mxu0 %v757
    %1200 = vmatprep.subr.mxu0 %v754
    %1201 = vmatpush1.msra.mxu0 %v753
    %1202 = vmatprep.subr.mxu0 %v750
    %1203 = vmatpush1.msra.mxu0 %v749
    %1204 = vmatprep.subr.mxu0 %v746
    %1205 = vmatpush1.msra.mxu0 %v745
    %1206 = vmatprep.subr.mxu0 %v742
    %1207 = vmatpush1.msra.mxu0 %v741
    %1208 = vmatprep.subr.mxu0 %v738
    %1209 = vmatpush1.msra.mxu0 %v737
    %1210 = vmatprep.subr.mxu0 %v734
    %1211 = vmatpush1.msra.mxu0 %v733
    %1212 = vmatprep.subr.mxu0 %v730
    %1213 = vmatpush1.msra.mxu0 %v729
    %1214 = vmatprep.subr.mxu0 %v726
    %1215 = vmatpush1.msra.mxu0 %v725
    %1216 = vmatprep.subr.mxu0 %v722
    %1217 = vmatpush1.msra.mxu0 %v721
    %1218 = vmatprep.subr.mxu0 %v718
    %1219 = vmatpush1.msra.mxu0 %v717
    %1220 = vmatprep.subr.mxu0 %v714
    %1221 = vmatpush1.msra.mxu0 %v713
    %1222 = vmatprep.subr.mxu0 %v710
    %1223 = vmatpush1.msra.mxu0 %v709
    %1224 = vmatprep.subr.mxu0 %v834
    %1225 = vmatpush2.msra.mxu0 %v833
    %1226 = vmatprep.subr.mxu0 %v830
    %1227 = vmatpush2.msra.mxu0 %v829
    %1228 = vmatprep.subr.mxu0 %v826
    %1229 = vmatpush2.msra.mxu0 %v825
    %1230 = vmatprep.subr.mxu0 %v822
    %1231 = vmatpush2.msra.mxu0 %v821
    %1232 = vmatprep.subr.mxu0 %v818
    %1233 = vmatpush2.msra.mxu0 %v817
    %1234 = vmatprep.subr.mxu0 %v814
    %1235 = vmatpush2.msra.mxu0 %v813
    %1236 = vmatprep.subr.mxu0 %v810
    %1237 = vmatpush2.msra.mxu0 %v809
    %1238 = vmatprep.subr.mxu0 %v806
    %1239 = vmatpush2.msra.mxu0 %v805
    %1240 = vmatprep.subr.mxu0 %v802
    %1241 = vmatpush2.msra.mxu0 %v801
    %1242 = vmatprep.subr.mxu0 %v798
    %1243 = vmatpush2.msra.mxu0 %v797
    %1244 = vmatprep.subr.mxu0 %v794
    %1245 = vmatpush2.msra.mxu0 %v793
    %1246 = vmatprep.subr.mxu0 %v790
    %1247 = vmatpush2.msra.mxu0 %v789
    %1248 = vmatprep.subr.mxu0 %v786
    %1249 = vmatpush2.msra.mxu0 %v785
    %1250 = vmatprep.subr.mxu0 %v782
    %1251 = vmatpush2.msra.mxu0 %v781
    %1252 = vmatprep.subr.mxu0 %v778
    %1253 = vmatpush2.msra.mxu0 %v777
    %1254 = vmatprep.subr.mxu0 %v774
    %1255 = vmatpush2.msra.mxu0 %v773
    %1256 = vmatprep.mubr.f32.mxu0 %v568
    %1257 = vmatmul.mubr.f32.gmra.mxu0 %v567
    %v1258 = vpop.f32.mrf.mxu0
    %v1259 = vadd.f32 %v1182, %v1258
    %v1260 = vpop.f32.mrf.mxu0
    %v1261 = vadd.f32 %v1184, %v1260
    %1262 = vmatprep.mubr.f32.mxu0 %v576
    %1263 = vmatmul.mubr.f32.gmra.mxu0 %v575
    %v1264 = vpop.f32.mrf.mxu0
    %v1265 = vadd.f32 %v1188, %v1264
    %v1266 = vpop.f32.mrf.mxu0
    %v1267 = vadd.f32 %v1190, %v1266
    %1268 = vdwg.mxu0
    %1269 = vmatprep.subr.mxu0 %v898
    %1270 = vmatpush1.msra.mxu0 %v897
    %1271 = vmatprep.subr.mxu0 %v894
    %1272 = vmatpush1.msra.mxu0 %v893
    %1273 = vmatprep.subr.mxu0 %v890
    %1274 = vmatpush1.msra.mxu0 %v889
    %1275 = vmatprep.subr.mxu0 %v886
    %1276 = vmatpush1.msra.mxu0 %v885
    %1277 = vmatprep.subr.mxu0 %v882
    %1278 = vmatpush1.msra.mxu0 %v881
    %1279 = vmatprep.subr.mxu0 %v878
    %1280 = vmatpush1.msra.mxu0 %v877
    %1281 = vmatprep.subr.mxu0 %v874
    %1282 = vmatpush1.msra.mxu0 %v873
    %1283 = vmatprep.subr.mxu0 %v870
    %1284 = vmatpush1.msra.mxu0 %v869
    %1285 = vmatprep.subr.mxu0 %v866
    %1286 = vmatpush1.msra.mxu0 %v865
    %1287 = vmatprep.subr.mxu0 %v862
    %1288 = vmatpush1.msra.mxu0 %v861
    %1289 = vmatprep.subr.mxu0 %v858
    %1290 = vmatpush1.msra.mxu0 %v857
    %1291 = vmatprep.subr.mxu0 %v854
    %1292 = vmatpush1.msra.mxu0 %v853
    %1293 = vmatprep.subr.mxu0 %v850
    %1294 = vmatpush1.msra.mxu0 %v849
    %1295 = vmatprep.subr.mxu0 %v846
    %1296 = vmatpush1.msra.mxu0 %v845
    %1297 = vmatprep.subr.mxu0 %v842
    %1298 = vmatpush1.msra.mxu0 %v841
    %1299 = vmatprep.subr.mxu0 %v838
    %1300 = vmatpush1.msra.mxu0 %v837
    %1301 = vmatprep.subr.mxu0 %v962
    %1302 = vmatpush2.msra.mxu0 %v961
    %1303 = vmatprep.subr.mxu0 %v958
    %1304 = vmatpush2.msra.mxu0 %v957
    %1305 = vmatprep.subr.mxu0 %v954
    %1306 = vmatpush2.msra.mxu0 %v953
    %1307 = vmatprep.subr.mxu0 %v950
    %1308 = vmatpush2.msra.mxu0 %v949
    %1309 = vmatprep.subr.mxu0 %v946
    %1310 = vmatpush2.msra.mxu0 %v945
    %1311 = vmatprep.subr.mxu0 %v942
    %1312 = vmatpush2.msra.mxu0 %v941
    %1313 = vmatprep.subr.mxu0 %v938
    %1314 = vmatpush2.msra.mxu0 %v937
    %1315 = vmatprep.subr.mxu0 %v934
    %1316 = vmatpush2.msra.mxu0 %v933
    %1317 = vmatprep.subr.mxu0 %v930
    %1318 = vmatpush2.msra.mxu0 %v929
    %1319 = vmatprep.subr.mxu0 %v926
    %1320 = vmatpush2.msra.mxu0 %v925
    %1321 = vmatprep.subr.mxu0 %v922
    %1322 = vmatpush2.msra.mxu0 %v921
    %1323 = vmatprep.subr.mxu0 %v918
    %1324 = vmatpush2.msra.mxu0 %v917
    %1325 = vmatprep.subr.mxu0 %v914
    %1326 = vmatpush2.msra.mxu0 %v913
    %1327 = vmatprep.subr.mxu0 %v910
    %1328 = vmatpush2.msra.mxu0 %v909
    %1329 = vmatprep.subr.mxu0 %v906
    %1330 = vmatpush2.msra.mxu0 %v905
    %1331 = vmatprep.subr.mxu0 %v902
    %1332 = vmatpush2.msra.mxu0 %v901
    %1333 = vmatprep.mubr.f32.mxu0 %v570
    %1334 = vmatmul.mubr.f32.gmra.mxu0 %v569
    %v1335 = vpop.f32.mrf.mxu0
    %v1336 = vadd.f32 %v1259, %v1335
    %v1337 = vpop.f32.mrf.mxu0
    %v1338 = vadd.f32 %v1261, %v1337
    %1339 = vmatprep.mubr.f32.mxu0 %v578
    %1340 = vmatmul.mubr.f32.gmra.mxu0 %v577
    %v1341 = vpop.f32.mrf.mxu0
    %v1342 = vadd.f32 %v1265, %v1341
    %v1343 = vpop.f32.mrf.mxu0
    %v1344 = vadd.f32 %v1267, %v1343
    %1345 = vdwg.mxu0
    %1346 = vmatprep.subr.mxu0 %v1026
    %1347 = vmatpush1.msra.mxu0 %v1025
    %1348 = vmatprep.subr.mxu0 %v1022
    %1349 = vmatpush1.msra.mxu0 %v1021
    %1350 = vmatprep.subr.mxu0 %v1018
    %1351 = vmatpush1.msra.mxu0 %v1017
    %1352 = vmatprep.subr.mxu0 %v1014
    %1353 = vmatpush1.msra.mxu0 %v1013
    %1354 = vmatprep.subr.mxu0 %v1010
    %1355 = vmatpush1.msra.mxu0 %v1009
    %1356 = vmatprep.subr.mxu0 %v1006
    %1357 = vmatpush1.msra.mxu0 %v1005
    %1358 = vmatprep.subr.mxu0 %v1002
    %1359 = vmatpush1.msra.mxu0 %v1001
    %1360 = vmatprep.subr.mxu0 %v998
    %1361 = vmatpush1.msra.mxu0 %v997
    %1362 = vmatprep.subr.mxu0 %v994
    %1363 = vmatpush1.msra.mxu0 %v993
    %1364 = vmatprep.subr.mxu0 %v990
    %1365 = vmatpush1.msra.mxu0 %v989
    %1366 = vmatprep.subr.mxu0 %v986
    %1367 = vmatpush1.msra.mxu0 %v985
    %1368 = vmatprep.subr.mxu0 %v982
    %1369 = vmatpush1.msra.mxu0 %v981
    %1370 = vmatprep.subr.mxu0 %v978
    %1371 = vmatpush1.msra.mxu0 %v977
    %1372 = vmatprep.subr.mxu0 %v974
    %1373 = vmatpush1.msra.mxu0 %v973
    %1374 = vmatprep.subr.mxu0 %v970
    %1375 = vmatpush1.msra.mxu0 %v969
    %1376 = vmatprep.subr.mxu0 %v966
    %1377 = vmatpush1.msra.mxu0 %v965
    %1378 = vmatprep.subr.mxu0 %v1090
    %1379 = vmatpush2.msra.mxu0 %v1089
    %1380 = vmatprep.subr.mxu0 %v1086
    %1381 = vmatpush2.msra.mxu0 %v1085
    %1382 = vmatprep.subr.mxu0 %v1082
    %1383 = vmatpush2.msra.mxu0 %v1081
    %1384 = vmatprep.subr.mxu0 %v1078
    %1385 = vmatpush2.msra.mxu0 %v1077
    %1386 = vmatprep.subr.mxu0 %v1074
    %1387 = vmatpush2.msra.mxu0 %v1073
    %1388 = vmatprep.subr.mxu0 %v1070
    %1389 = vmatpush2.msra.mxu0 %v1069
    %1390 = vmatprep.subr.mxu0 %v1066
    %1391 = vmatpush2.msra.mxu0 %v1065
    %1392 = vmatprep.subr.mxu0 %v1062
    %1393 = vmatpush2.msra.mxu0 %v1061
    %1394 = vmatprep.subr.mxu0 %v1058
    %1395 = vmatpush2.msra.mxu0 %v1057
    %1396 = vmatprep.subr.mxu0 %v1054
    %1397 = vmatpush2.msra.mxu0 %v1053
    %1398 = vmatprep.subr.mxu0 %v1050
    %1399 = vmatpush2.msra.mxu0 %v1049
    %1400 = vmatprep.subr.mxu0 %v1046
    %1401 = vmatpush2.msra.mxu0 %v1045
    %1402 = vmatprep.subr.mxu0 %v1042
    %1403 = vmatpush2.msra.mxu0 %v1041
    %1404 = vmatprep.subr.mxu0 %v1038
    %1405 = vmatpush2.msra.mxu0 %v1037
    %1406 = vmatprep.subr.mxu0 %v1034
    %1407 = vmatpush2.msra.mxu0 %v1033
    %1408 = vmatprep.subr.mxu0 %v1030
    %1409 = vmatpush2.msra.mxu0 %v1029
    %1410 = vmatprep.mubr.f32.mxu0 %v572
    %1411 = vmatmul.mubr.f32.gmra.mxu0 %v571
    %v1412 = vpop.f32.mrf.mxu0
    %v1413 = vadd.f32 %v1336, %v1412
    %v1414 = vpop.f32.mrf.mxu0
    %v1415 = vadd.f32 %v1338, %v1414
    %1416 = vmatprep.mubr.f32.mxu0 %v580
    %1417 = vmatmul.mubr.f32.gmra.mxu0 %v579
    %v1418 = vpop.f32.mrf.mxu0
    %v1419 = vadd.f32 %v1342, %v1418
    %v1420 = vpop.f32.mrf.mxu0
    %v1421 = vadd.f32 %v1344, %v1420
    %1422 = vdwg.mxu0
    %1423 = vmatprep.subr.mxu0 %v644
    %1424 = vmatpush1.msra.mxu0 %v643
    %1425 = vmatprep.subr.mxu0 %v640
    %1426 = vmatpush1.msra.mxu0 %v639
    %1427 = vmatprep.subr.mxu0 %v636
    %1428 = vmatpush1.msra.mxu0 %v635
    %1429 = vmatprep.subr.mxu0 %v632
    %1430 = vmatpush1.msra.mxu0 %v631
    %1431 = vmatprep.subr.mxu0 %v628
    %1432 = vmatpush1.msra.mxu0 %v627
    %1433 = vmatprep.subr.mxu0 %v624
    %1434 = vmatpush1.msra.mxu0 %v623
    %1435 = vmatprep.subr.mxu0 %v620
    %1436 = vmatpush1.msra.mxu0 %v619
    %1437 = vmatprep.subr.mxu0 %v616
    %1438 = vmatpush1.msra.mxu0 %v615
    %1439 = vmatprep.subr.mxu0 %v612
    %1440 = vmatpush1.msra.mxu0 %v611
    %1441 = vmatprep.subr.mxu0 %v608
    %1442 = vmatpush1.msra.mxu0 %v607
    %1443 = vmatprep.subr.mxu0 %v604
    %1444 = vmatpush1.msra.mxu0 %v603
    %1445 = vmatprep.subr.mxu0 %v600
    %1446 = vmatpush1.msra.mxu0 %v599
    %1447 = vmatprep.subr.mxu0 %v596
    %1448 = vmatpush1.msra.mxu0 %v595
    %1449 = vmatprep.subr.mxu0 %v592
    %1450 = vmatpush1.msra.mxu0 %v591
    %1451 = vmatprep.subr.mxu0 %v588
    %1452 = vmatpush1.msra.mxu0 %v587
    %1453 = vmatprep.subr.mxu0 %v584
    %1454 = vmatpush1.msra.mxu0 %v583
    %1455 = vmatprep.subr.mxu0 %v708
    %1456 = vmatpush2.msra.mxu0 %v707
    %1457 = vmatprep.subr.mxu0 %v704
    %1458 = vmatpush2.msra.mxu0 %v703
    %1459 = vmatprep.subr.mxu0 %v700
    %1460 = vmatpush2.msra.mxu0 %v699
    %1461 = vmatprep.subr.mxu0 %v696
    %1462 = vmatpush2.msra.mxu0 %v695
    %1463 = vmatprep.subr.mxu0 %v692
    %1464 = vmatpush2.msra.mxu0 %v691
    %1465 = vmatprep.subr.mxu0 %v688
    %1466 = vmatpush2.msra.mxu0 %v687
    %1467 = vmatprep.subr.mxu0 %v684
    %1468 = vmatpush2.msra.mxu0 %v683
    %1469 = vmatprep.subr.mxu0 %v680
    %1470 = vmatpush2.msra.mxu0 %v679
    %1471 = vmatprep.subr.mxu0 %v676
    %1472 = vmatpush2.msra.mxu0 %v675
    %1473 = vmatprep.subr.mxu0 %v672
    %1474 = vmatpush2.msra.mxu0 %v671
    %1475 = vmatprep.subr.mxu0 %v668
    %1476 = vmatpush2.msra.mxu0 %v667
    %1477 = vmatprep.subr.mxu0 %v664
    %1478 = vmatpush2.msra.mxu0 %v663
    %1479 = vmatprep.subr.mxu0 %v660
    %1480 = vmatpush2.msra.mxu0 %v659
    %1481 = vmatprep.subr.mxu0 %v656
    %1482 = vmatpush2.msra.mxu0 %v655
    %1483 = vmatprep.subr.mxu0 %v652
    %1484 = vmatpush2.msra.mxu0 %v651
    %1485 = vmatprep.subr.mxu0 %v648
    %1486 = vmatpush2.msra.mxu0 %v647
    %1487 = vmatprep.mubr.f32.mxu0 %v566
    %1488 = vmatmul.mubr.f32.gmra.mxu0 %v565
    %v1489 = vpop.f32.mrf.mxu0
    %v1490 = vadd.f32 %v1106, %v1489
    %v1491 = vpop.f32.mrf.mxu0
    %v1492 = vadd.f32 %v1110, %v1491
    %1493 = vmatprep.mubr.f32.mxu0 %v574
    %1494 = vmatmul.mubr.f32.gmra.mxu0 %v573
    %v1495 = vpop.f32.mrf.mxu0
    %v1496 = vadd.f32 %v1106, %v1495
    %v1497 = vpop.f32.mrf.mxu0
    %v1498 = vadd.f32 %v1110, %v1497
    %1499 = vdwg.mxu0
    %1500 = vmatprep.subr.mxu0 %v772
    %1501 = vmatpush1.msra.mxu0 %v771
    %1502 = vmatprep.subr.mxu0 %v768
    %1503 = vmatpush1.msra.mxu0 %v767
    %1504 = vmatprep.subr.mxu0 %v764
    %1505 = vmatpush1.msra.mxu0 %v763
    %1506 = vmatprep.subr.mxu0 %v760
    %1507 = vmatpush1.msra.mxu0 %v759
    %1508 = vmatprep.subr.mxu0 %v756
    %1509 = vmatpush1.msra.mxu0 %v755
    %1510 = vmatprep.subr.mxu0 %v752
    %1511 = vmatpush1.msra.mxu0 %v751
    %1512 = vmatprep.subr.mxu0 %v748
    %1513 = vmatpush1.msra.mxu0 %v747
    %1514 = vmatprep.subr.mxu0 %v744
    %1515 = vmatpush1.msra.mxu0 %v743
    %1516 = vmatprep.subr.mxu0 %v740
    %1517 = vmatpush1.msra.mxu0 %v739
    %1518 = vmatprep.subr.mxu0 %v736
    %1519 = vmatpush1.msra.mxu0 %v735
    %1520 = vmatprep.subr.mxu0 %v732
    %1521 = vmatpush1.msra.mxu0 %v731
    %1522 = vmatprep.subr.mxu0 %v728
    %1523 = vmatpush1.msra.mxu0 %v727
    %1524 = vmatprep.subr.mxu0 %v724
    %1525 = vmatpush1.msra.mxu0 %v723
    %1526 = vmatprep.subr.mxu0 %v720
    %1527 = vmatpush1.msra.mxu0 %v719
    %1528 = vmatprep.subr.mxu0 %v716
    %1529 = vmatpush1.msra.mxu0 %v715
    %1530 = vmatprep.subr.mxu0 %v712
    %1531 = vmatpush1.msra.mxu0 %v711
    %1532 = vmatprep.subr.mxu0 %v836
    %1533 = vmatpush2.msra.mxu0 %v835
    %1534 = vmatprep.subr.mxu0 %v832
    %1535 = vmatpush2.msra.mxu0 %v831
    %1536 = vmatprep.subr.mxu0 %v828
    %1537 = vmatpush2.msra.mxu0 %v827
    %1538 = vmatprep.subr.mxu0 %v824
    %1539 = vmatpush2.msra.mxu0 %v823
    %1540 = vmatprep.subr.mxu0 %v820
    %1541 = vmatpush2.msra.mxu0 %v819
    %1542 = vmatprep.subr.mxu0 %v816
    %1543 = vmatpush2.msra.mxu0 %v815
    %1544 = vmatprep.subr.mxu0 %v812
    %1545 = vmatpush2.msra.mxu0 %v811
    %1546 = vmatprep.subr.mxu0 %v808
    %1547 = vmatpush2.msra.mxu0 %v807
    %1548 = vmatprep.subr.mxu0 %v804
    %1549 = vmatpush2.msra.mxu0 %v803
    %1550 = vmatprep.subr.mxu0 %v800
    %1551 = vmatpush2.msra.mxu0 %v799
    %1552 = vmatprep.subr.mxu0 %v796
    %1553 = vmatpush2.msra.mxu0 %v795
    %1554 = vmatprep.subr.mxu0 %v792
    %1555 = vmatpush2.msra.mxu0 %v791
    %1556 = vmatprep.subr.mxu0 %v788
    %1557 = vmatpush2.msra.mxu0 %v787
    %1558 = vmatprep.subr.mxu0 %v784
    %1559 = vmatpush2.msra.mxu0 %v783
    %1560 = vmatprep.subr.mxu0 %v780
    %1561 = vmatpush2.msra.mxu0 %v779
    %1562 = vmatprep.subr.mxu0 %v776
    %1563 = vmatpush2.msra.mxu0 %v775
    %1564 = vmatprep.mubr.f32.mxu0 %v568
    %1565 = vmatmul.mubr.f32.gmra.mxu0 %v567
    %v1566 = vpop.f32.mrf.mxu0
    %v1567 = vadd.f32 %v1490, %v1566
    %v1568 = vpop.f32.mrf.mxu0
    %v1569 = vadd.f32 %v1492, %v1568
    %1570 = vmatprep.mubr.f32.mxu0 %v576
    %1571 = vmatmul.mubr.f32.gmra.mxu0 %v575
    %v1572 = vpop.f32.mrf.mxu0
    %v1573 = vadd.f32 %v1496, %v1572
    %v1574 = vpop.f32.mrf.mxu0
    %v1575 = vadd.f32 %v1498, %v1574
    %1576 = vdwg.mxu0
    %1577 = vmatprep.subr.mxu0 %v900
    %1578 = vmatpush1.msra.mxu0 %v899
    %1579 = vmatprep.subr.mxu0 %v896
    %1580 = vmatpush1.msra.mxu0 %v895
    %1581 = vmatprep.subr.mxu0 %v892
    %1582 = vmatpush1.msra.mxu0 %v891
    %1583 = vmatprep.subr.mxu0 %v888
    %1584 = vmatpush1.msra.mxu0 %v887
    %1585 = vmatprep.subr.mxu0 %v884
    %1586 = vmatpush1.msra.mxu0 %v883
    %1587 = vmatprep.subr.mxu0 %v880
    %1588 = vmatpush1.msra.mxu0 %v879
    %1589 = vmatprep.subr.mxu0 %v876
    %1590 = vmatpush1.msra.mxu0 %v875
    %1591 = vmatprep.subr.mxu0 %v872
    %1592 = vmatpush1.msra.mxu0 %v871
    %1593 = vmatprep.subr.mxu0 %v868
    %1594 = vmatpush1.msra.mxu0 %v867
    %1595 = vmatprep.subr.mxu0 %v864
    %1596 = vmatpush1.msra.mxu0 %v863
    %1597 = vmatprep.subr.mxu0 %v860
    %1598 = vmatpush1.msra.mxu0 %v859
    %1599 = vmatprep.subr.mxu0 %v856
    %1600 = vmatpush1.msra.mxu0 %v855
    %1601 = vmatprep.subr.mxu0 %v852
    %1602 = vmatpush1.msra.mxu0 %v851
    %1603 = vmatprep.subr.mxu0 %v848
    %1604 = vmatpush1.msra.mxu0 %v847
    %1605 = vmatprep.subr.mxu0 %v844
    %1606 = vmatpush1.msra.mxu0 %v843
    %1607 = vmatprep.subr.mxu0 %v840
    %1608 = vmatpush1.msra.mxu0 %v839
    %1609 = vmatprep.subr.mxu0 %v964
    %1610 = vmatpush2.msra.mxu0 %v963
    %1611 = vmatprep.subr.mxu0 %v960
    %1612 = vmatpush2.msra.mxu0 %v959
    %1613 = vmatprep.subr.mxu0 %v956
    %1614 = vmatpush2.msra.mxu0 %v955
    %1615 = vmatprep.subr.mxu0 %v952
    %1616 = vmatpush2.msra.mxu0 %v951
    %1617 = vmatprep.subr.mxu0 %v948
    %1618 = vmatpush2.msra.mxu0 %v947
    %1619 = vmatprep.subr.mxu0 %v944
    %1620 = vmatpush2.msra.mxu0 %v943
    %1621 = vmatprep.subr.mxu0 %v940
    %1622 = vmatpush2.msra.mxu0 %v939
    %1623 = vmatprep.subr.mxu0 %v936
    %1624 = vmatpush2.msra.mxu0 %v935
    %1625 = vmatprep.subr.mxu0 %v932
    %1626 = vmatpush2.msra.mxu0 %v931
    %1627 = vmatprep.subr.mxu0 %v928
    %1628 = vmatpush2.msra.mxu0 %v927
    %1629 = vmatprep.subr.mxu0 %v924
    %1630 = vmatpush2.msra.mxu0 %v923
    %1631 = vmatprep.subr.mxu0 %v920
    %1632 = vmatpush2.msra.mxu0 %v919
    %1633 = vmatprep.subr.mxu0 %v916
    %1634 = vmatpush2.msra.mxu0 %v915
    %1635 = vmatprep.subr.mxu0 %v912
    %1636 = vmatpush2.msra.mxu0 %v911
    %1637 = vmatprep.subr.mxu0 %v908
    %1638 = vmatpush2.msra.mxu0 %v907
    %1639 = vmatprep.subr.mxu0 %v904
    %1640 = vmatpush2.msra.mxu0 %v903
    %1641 = vmatprep.mubr.f32.mxu0 %v570
    %1642 = vmatmul.mubr.f32.gmra.mxu0 %v569
    %v1643 = vpop.f32.mrf.mxu0
    %v1644 = vadd.f32 %v1567, %v1643
    %v1645 = vpop.f32.mrf.mxu0
    %v1646 = vadd.f32 %v1569, %v1645
    %1647 = vmatprep.mubr.f32.mxu0 %v578
    %1648 = vmatmul.mubr.f32.gmra.mxu0 %v577
    %v1649 = vpop.f32.mrf.mxu0
    %v1650 = vadd.f32 %v1573, %v1649
    %v1651 = vpop.f32.mrf.mxu0
    %v1652 = vadd.f32 %v1575, %v1651
    %1653 = vdwg.mxu0
    %1654 = vmatprep.subr.mxu0 %v1028
    %1655 = vmatpush1.msra.mxu0 %v1027
    %1656 = vmatprep.subr.mxu0 %v1024
    %1657 = vmatpush1.msra.mxu0 %v1023
    %1658 = vmatprep.subr.mxu0 %v1020
    %1659 = vmatpush1.msra.mxu0 %v1019
    %1660 = vmatprep.subr.mxu0 %v1016
    %1661 = vmatpush1.msra.mxu0 %v1015
    %1662 = vmatprep.subr.mxu0 %v1012
    %1663 = vmatpush1.msra.mxu0 %v1011
    %1664 = vmatprep.subr.mxu0 %v1008
    %1665 = vmatpush1.msra.mxu0 %v1007
    %1666 = vmatprep.subr.mxu0 %v1004
    %1667 = vmatpush1.msra.mxu0 %v1003
    %1668 = vmatprep.subr.mxu0 %v1000
    %1669 = vmatpush1.msra.mxu0 %v999
    %1670 = vmatprep.subr.mxu0 %v996
    %1671 = vmatpush1.msra.mxu0 %v995
    %1672 = vmatprep.subr.mxu0 %v992
    %1673 = vmatpush1.msra.mxu0 %v991
    %1674 = vmatprep.subr.mxu0 %v988
    %1675 = vmatpush1.msra.mxu0 %v987
    %1676 = vmatprep.subr.mxu0 %v984
    %1677 = vmatpush1.msra.mxu0 %v983
    %1678 = vmatprep.subr.mxu0 %v980
    %1679 = vmatpush1.msra.mxu0 %v979
    %1680 = vmatprep.subr.mxu0 %v976
    %1681 = vmatpush1.msra.mxu0 %v975
    %1682 = vmatprep.subr.mxu0 %v972
    %1683 = vmatpush1.msra.mxu0 %v971
    %1684 = vmatprep.subr.mxu0 %v968
    %1685 = vmatpush1.msra.mxu0 %v967
    %1686 = vmatprep.subr.mxu0 %v1092
    %1687 = vmatpush2.msra.mxu0 %v1091
    %1688 = vmatprep.subr.mxu0 %v1088
    %1689 = vmatpush2.msra.mxu0 %v1087
    %1690 = vmatprep.subr.mxu0 %v1084
    %1691 = vmatpush2.msra.mxu0 %v1083
    %1692 = vmatprep.subr.mxu0 %v1080
    %1693 = vmatpush2.msra.mxu0 %v1079
    %1694 = vmatprep.subr.mxu0 %v1076
    %1695 = vmatpush2.msra.mxu0 %v1075
    %1696 = vmatprep.subr.mxu0 %v1072
    %1697 = vmatpush2.msra.mxu0 %v1071
    %1698 = vmatprep.subr.mxu0 %v1068
    %1699 = vmatpush2.msra.mxu0 %v1067
    %1700 = vmatprep.subr.mxu0 %v1064
    %1701 = vmatpush2.msra.mxu0 %v1063
    %1702 = vmatprep.subr.mxu0 %v1060
    %1703 = vmatpush2.msra.mxu0 %v1059
    %1704 = vmatprep.subr.mxu0 %v1056
    %1705 = vmatpush2.msra.mxu0 %v1055
    %1706 = vmatprep.subr.mxu0 %v1052
    %1707 = vmatpush2.msra.mxu0 %v1051
    %1708 = vmatprep.subr.mxu0 %v1048
    %1709 = vmatpush2.msra.mxu0 %v1047
    %1710 = vmatprep.subr.mxu0 %v1044
    %1711 = vmatpush2.msra.mxu0 %v1043
    %1712 = vmatprep.subr.mxu0 %v1040
    %1713 = vmatpush2.msra.mxu0 %v1039
    %1714 = vmatprep.subr.mxu0 %v1036
    %1715 = vmatpush2.msra.mxu0 %v1035
    %1716 = vmatprep.subr.mxu0 %v1032
    %1717 = vmatpush2.msra.mxu0 %v1031
    %1718 = vmatprep.mubr.f32.mxu0 %v572
    %1719 = vmatmul.mubr.f32.gmra.mxu0 %v571
    %v1720 = vpop.f32.mrf.mxu0
    %v1721 = vadd.f32 %v1644, %v1720
    %v1722 = vpop.f32.mrf.mxu0
    %v1723 = vadd.f32 %v1646, %v1722
    %1724 = vmatprep.mubr.f32.mxu0 %v580
    %1725 = vmatmul.mubr.f32.gmra.mxu0 %v579
    %v1726 = vpop.f32.mrf.mxu0
    %v1727 = vadd.f32 %v1650, %v1726
    %v1728 = vpop.f32.mrf.mxu0
    %v1729 = vadd.f32 %v1652, %v1728
    %1730 = vdwg.mxu0
    %1731 = vst [vmem:[#allocation11] sm:$0xff] %v1413
    %1732 = vst [vmem:[#allocation11 + $0x8] sm:$0xff] %v1415
    %1733 = vst [vmem:[#allocation11 + $0x10] sm:$0xff] %v1721
    %1734 = vst [vmem:[#allocation11 + $0x18] sm:$0xff] %v1723
    %1735 = vst [vmem:[#allocation11 + $0x20] sm:$0xff] %v1419
    %1736 = vst [vmem:[#allocation11 + $0x28] sm:$0xff] %v1421
    %1737 = vst [vmem:[#allocation11 + $0x30] sm:$0xff] %v1727
    %1738 = vst [vmem:[#allocation11 + $0x38] sm:$0xff] %v1729
    // Predicated region
    $region42: #{tpu_custom_call.1} parent=1 // pred_check
      _
    $region43: #{tpu_custom_call.1} parent=1 // pred_check_branch
      %1740 = sbr.rel (0) target = $region45
    $region44: #{tpu_custom_call.1} parent=1 // pred_region
      %s1742 = ssub.s32 1024, 1024
      %1743 = vsyncadd [#allocation4], %s1742
      %s1744 = sshll.u32 [#allocation11], 4
      %s1745 = int_to_ptr.vmem [resolvable:$true] %s1744
      %1750 = dma.vmem_to_hbm [thread:$0]  %s1745, 1024, %s5, [#allocation4], 512, 512, 32
    $region45: #{tpu_custom_call.1} parent=1 // pred_fallthru
      _
    // Predicated region
    $region46: #{tpu_custom_call.1} parent=1 // pred_check
      _
    $region47: #{tpu_custom_call.1} parent=1 // pred_check_branch
      %1752 = sbr.rel (0) target = $region49
    $region48: #{tpu_custom_call.1} parent=1 // pred_region
      %1753 = dma.done [#allocation4], 1024
    $region49: #{tpu_custom_call.1} parent=1 // pred_fallthru
      _
    %1754 = vsyncpa [#allocation3], 1
    %1755 = vsyncpa [#allocation6], 1
    %1756 = vsyncpa [#allocation9], 1
    %1757 = vsyncpa [#allocation4], 1

</llo_original>
